<compile_context>
chip_gen: v5e
topology: v5e:2x2
jax: 0.10.0
libtpu: 0.0.40
codegen_flags: <defaults>
</compile_context>

<pallas_src>
import math
from functools import partial

import jax
import jax.numpy as jnp
from jax.experimental import pallas as pl
from jax.experimental.pallas import tpu as pltpu


# ---------------------------------------------------------------------------
# Pallas kernel
# ---------------------------------------------------------------------------
def _layernorm(v, w, b, eps=1e-5):
    mu = jnp.mean(v, axis=-1, keepdims=True)
    var = jnp.mean((v - mu) ** 2, axis=-1, keepdims=True)
    return (v - mu) * jax.lax.rsqrt(var + eps) * w + b


def block_kernel(num_heads,
                 x_q_ref, x_kv_ref,
                 ln1w_ref, ln1b_ref,
                 wq_ref, wk_ref, wv_ref, bq_ref, bk_ref, bv_ref,
                 wo_ref, bo_ref,
                 ln2w_ref, ln2b_ref,
                 w1_ref, b1_ref, w2_ref, b2_ref,
                 o_ref):
    TQ = x_q_ref.shape[1]
    S = x_kv_ref.shape[1]
    E = x_q_ref.shape[2]
    H = num_heads
    Dh = E // H
    scale = 1.0 / math.sqrt(Dh)

    qi = pl.program_id(1)
    q_start = qi * TQ

    x_q = x_q_ref[0]     # (TQ, E) f32 — query rows of this tile
    x_kv = x_kv_ref[0]   # (S, E)  f32 — full sequence for K/V

    ln1w = ln1w_ref[...]
    ln1b = ln1b_ref[...]

    # --- ln_1 ---
    xn_q = _layernorm(x_q, ln1w, ln1b)        # (TQ, E) f32
    xn_kv = _layernorm(x_kv, ln1w, ln1b)      # (S, E)  f32

    xq_b = xn_q.astype(jnp.bfloat16)
    xkv_b = xn_kv.astype(jnp.bfloat16)

    # --- QKV projections (bf16 MXU, f32 accumulate) ---
    q = jnp.dot(xq_b, wq_ref[...], preferred_element_type=jnp.float32) + bq_ref[...]
    k = jnp.dot(xkv_b, wk_ref[...], preferred_element_type=jnp.float32) + bk_ref[...]
    v = jnp.dot(xkv_b, wv_ref[...], preferred_element_type=jnp.float32) + bv_ref[...]

    # --- head-batched attention: (rows, H, Dh) layout, single batched matmul ---
    qh = (q * scale).reshape(TQ, H, Dh).astype(jnp.bfloat16)
    kh = k.reshape(S, H, Dh).astype(jnp.bfloat16)
    vh = v.reshape(S, H, Dh).astype(jnp.bfloat16)

    s = jnp.einsum('qhd,khd->hqk', qh, kh,
                   preferred_element_type=jnp.float32)          # (H, TQ, S)

    row = q_start + jax.lax.broadcasted_iota(jnp.int32, (TQ, S), 0)
    col = jax.lax.broadcasted_iota(jnp.int32, (TQ, S), 1)
    causal = (col > row)[None, :, :]                             # (1, TQ, S)
    s = jnp.where(causal, -1e30, s)   # large finite negative; diag never masked

    m = jnp.max(s, axis=-1, keepdims=True)
    p = jnp.exp(s - m)
    denom = jnp.sum(p, axis=-1, keepdims=True)
    p = p * pl.reciprocal(denom, approx=True)                    # EUP, not VALU

    attn = jnp.einsum('hqk,khd->qhd', p.astype(jnp.bfloat16), vh,
                      preferred_element_type=jnp.float32).reshape(TQ, E)
    attn = jnp.dot(attn.astype(jnp.bfloat16), wo_ref[...],
                   preferred_element_type=jnp.float32) + bo_ref[...]

    # residual uses ln_1(x), exactly as the torch code does
    x2 = xn_q + attn

    # --- ln_2 + MLP (Linear -> exact erf GELU -> Linear) ---
    xn2 = _layernorm(x2, ln2w_ref[...], ln2b_ref[...])
    h1 = jnp.dot(xn2.astype(jnp.bfloat16), w1_ref[...],
                 preferred_element_type=jnp.float32) + b1_ref[...]
    g = 0.5 * h1 * (1.0 + jax.lax.erf(h1 * (1.0 / math.sqrt(2.0))))
    mlp = jnp.dot(g.astype(jnp.bfloat16), w2_ref[...],
                  preferred_element_type=jnp.float32) + b2_ref[...]

    o_ref[0] = (x2 + mlp).astype(o_ref.dtype)


# ---------------------------------------------------------------------------
# Wrapper
# ---------------------------------------------------------------------------
def gpt2_block(x_sbe, params, num_heads, q_tile=None):
    """x_sbe: (S, B, E) float32. Returns (S, B, E)."""
    S, B, E = x_sbe.shape
    if q_tile is None:
        q_tile = min(S, 256)
    if S % q_tile != 0:
        q_tile = S
    n_qt = S // q_tile

    x_bse = jnp.transpose(x_sbe, (1, 0, 2))
    bf16 = jnp.bfloat16

    # Weight matrices in bf16 (halves weight DMA/VMEM); biases/LN params f32.
    plist = [
        params["ln1_w"].reshape(1, E), params["ln1_b"].reshape(1, E),
        params["wq"].astype(bf16), params["wk"].astype(bf16),
        params["wv"].astype(bf16),
        params["bq"].reshape(1, E), params["bk"].reshape(1, E),
        params["bv"].reshape(1, E),
        params["wo"].astype(bf16), params["bo"].reshape(1, E),
        params["ln2_w"].reshape(1, E), params["ln2_b"].reshape(1, E),
        params["w1"].astype(bf16), params["b1"].reshape(1, 4 * E),
        params["w2"].astype(bf16), params["b2"].reshape(1, E),
    ]

    def _rep_spec(a):
        zeros = (0,) * a.ndim
        return pl.BlockSpec(a.shape, lambda b, qi, _z=zeros: _z)

    flops = int(B * (24 * S * E * E + 4 * S * S * E))
    transcendentals = int(B * (num_heads * S * S + 4 * S * E))
    bytes_accessed = int(2 * x_sbe.size * 4
                         + sum(int(p.size) * p.dtype.itemsize for p in plist))

    out = pl.pallas_call(
        partial(block_kernel, num_heads),
        out_shape=jax.ShapeDtypeStruct((B, S, E), x_sbe.dtype),
        grid=(B, n_qt),
        in_specs=[
            # query-row tile of x
            pl.BlockSpec((1, q_tile, E), lambda b, qi: (b, qi, 0)),
            # full sequence for K/V (constant block index across qi -> reused)
            pl.BlockSpec((1, S, E), lambda b, qi: (b, 0, 0)),
        ] + [_rep_spec(p) for p in plist],
        out_specs=pl.BlockSpec((1, q_tile, E), lambda b, qi: (b, qi, 0)),
        compiler_params=pltpu.CompilerParams(
            # batch axis parallel (v7x 2-TC sharding); q-tile axis sequential so
            # the full-S K/V input block is reused without re-DMA.
            dimension_semantics=("parallel", "arbitrary"),
            vmem_limit_bytes=48 * 1024 * 1024,
        ),
        cost_estimate=pl.CostEstimate(flops=flops,
                                      transcendentals=transcendentals,
                                      bytes_accessed=bytes_accessed),
    )(x_bse, x_bse, *plist)
    return jnp.transpose(out, (1, 0, 2))


# ---------------------------------------------------------------------------
# Pure-JAX reference (f32, same math) for correctness checking
# ---------------------------------------------------------------------------
def ref_block(x_sbe, p, num_heads):
    S, B, E = x_sbe.shape
    Dh = E // num_heads

    def ln(v, w, b):
        mu = v.mean(-1, keepdims=True)
        var = ((v - mu) ** 2).mean(-1, keepdims=True)
        return (v - mu) / jnp.sqrt(var + 1e-5) * w + b

    xn = ln(x_sbe, p["ln1_w"], p["ln1_b"])
    q = xn @ p["wq"] + p["bq"]
    k = xn @ p["wk"] + p["bk"]
    v = xn @ p["wv"] + p["bv"]
    qh = q.reshape(S, B, num_heads, Dh)
    kh = k.reshape(S, B, num_heads, Dh)
    vh = v.reshape(S, B, num_heads, Dh)
    scores = jnp.einsum("qbhd,kbhd->bhqk", qh, kh) / jnp.sqrt(float(Dh))
    mask = jnp.triu(jnp.ones((S, S), bool), 1)
    scores = jnp.where(mask, -jnp.inf, scores)
    w = jax.nn.softmax(scores, axis=-1)
    a = jnp.einsum("bhqk,kbhd->qbhd", w, vh).reshape(S, B, E)
    a = a @ p["wo"] + p["bo"]
    x2 = xn + a
    xn2 = ln(x2, p["ln2_w"], p["ln2_b"])
    h1 = xn2 @ p["w1"] + p["b1"]
    g = 0.5 * h1 * (1.0 + jax.lax.erf(h1 / jnp.sqrt(2.0)))
    m = g @ p["w2"] + p["b2"]
    return x2 + m


# ---------------------------------------------------------------------------
# Deterministic parameter init (synthetic; shapes follow the torch __init__)
# ---------------------------------------------------------------------------
def init_params(key, E):
    ks = jax.random.split(key, 8)
    s = 0.05
    return {
        "ln1_w": jnp.ones((E,), jnp.float32),
        "ln1_b": jnp.zeros((E,), jnp.float32),
        "ln2_w": jnp.ones((E,), jnp.float32),
        "ln2_b": jnp.zeros((E,), jnp.float32),
        "wq": s * jax.random.normal(ks[0], (E, E), jnp.float32),
        "wk": s * jax.random.normal(ks[1], (E, E), jnp.float32),
        "wv": s * jax.random.normal(ks[2], (E, E), jnp.float32),
        "bq": s * jax.random.normal(ks[3], (E,), jnp.float32),
        "bk": jnp.zeros((E,), jnp.float32),
        "bv": jnp.zeros((E,), jnp.float32),
        "wo": s * jax.random.normal(ks[4], (E, E), jnp.float32),
        "bo": jnp.zeros((E,), jnp.float32),
        "w1": s * jax.random.normal(ks[5], (E, 4 * E), jnp.float32),
        "b1": s * jax.random.normal(ks[6], (4 * E,), jnp.float32),
        "w2": s * jax.random.normal(ks[7], (4 * E, E), jnp.float32),
        "b2": jnp.zeros((E,), jnp.float32),
    }


if __name__ == "__main__":
    S, B, E, H = 8, 2, 32, 4
    key = jax.random.PRNGKey(0)
    kx, kp = jax.random.split(key)
    x = jax.random.normal(kx, (S, B, E), jnp.float32)  # (seq, batch, embed)
    params = init_params(kp, E)

    out = gpt2_block(x, params, H)
    out = jax.block_until_ready(out)

    ref = ref_block(x, params, H)
    assert out.shape == (S, B, E)
    err = float(jnp.max(jnp.abs(out - ref)))
    # bf16 MXU matmuls (f32 accumulation) + approx reciprocal => loosened tol
    assert err < 5e-2, err
    print("KERNEL_OK")
</pallas_src>

<mosaic_0001>
module attributes {stable_mosaic.version = 11 : i64} {
  func.func @block_kernel(%arg0: i32, %arg1: i32, %arg2: memref<1x8x32xf32, #tpu.memory_space<vmem>>, %arg3: memref<1x8x32xf32, #tpu.memory_space<vmem>>, %arg4: memref<1x32xf32, #tpu.memory_space<vmem>>, %arg5: memref<1x32xf32, #tpu.memory_space<vmem>>, %arg6: memref<32x32xbf16, #tpu.memory_space<vmem>>, %arg7: memref<32x32xbf16, #tpu.memory_space<vmem>>, %arg8: memref<32x32xbf16, #tpu.memory_space<vmem>>, %arg9: memref<1x32xf32, #tpu.memory_space<vmem>>, %arg10: memref<1x32xf32, #tpu.memory_space<vmem>>, %arg11: memref<1x32xf32, #tpu.memory_space<vmem>>, %arg12: memref<32x32xbf16, #tpu.memory_space<vmem>>, %arg13: memref<1x32xf32, #tpu.memory_space<vmem>>, %arg14: memref<1x32xf32, #tpu.memory_space<vmem>>, %arg15: memref<1x32xf32, #tpu.memory_space<vmem>>, %arg16: memref<32x128xbf16, #tpu.memory_space<vmem>>, %arg17: memref<1x128xf32, #tpu.memory_space<vmem>>, %arg18: memref<128x32xbf16, #tpu.memory_space<vmem>>, %arg19: memref<1x32xf32, #tpu.memory_space<vmem>>, %arg20: memref<1x8x32xf32, #tpu.memory_space<vmem>>) attributes {dimension_semantics = [#tpu.dimension_semantics<parallel>, #tpu.dimension_semantics<arbitrary>], iteration_bounds = array<i64: 2, 1>, scalar_prefetch = 0 : i64, scratch_operands = 0 : i64, tpu.core_type = #tpu.core_type<tc>, window_params = [{transform_indices = @transform_0, window_bounds = array<i64: 1, 8, 32>}, {transform_indices = @transform_1, window_bounds = array<i64: 1, 8, 32>}, {pipeline_mode = #tpu.pipeline_mode<synchronous>, transform_indices = @transform_2, window_bounds = array<i64: 1, 32>}, {pipeline_mode = #tpu.pipeline_mode<synchronous>, transform_indices = @transform_3, window_bounds = array<i64: 1, 32>}, {pipeline_mode = #tpu.pipeline_mode<synchronous>, transform_indices = @transform_4, window_bounds = array<i64: 32, 32>}, {pipeline_mode = #tpu.pipeline_mode<synchronous>, transform_indices = @transform_5, window_bounds = array<i64: 32, 32>}, {pipeline_mode = #tpu.pipeline_mode<synchronous>, transform_indices = @transform_6, window_bounds = array<i64: 32, 32>}, {pipeline_mode = #tpu.pipeline_mode<synchronous>, transform_indices = @transform_7, window_bounds = array<i64: 1, 32>}, {pipeline_mode = #tpu.pipeline_mode<synchronous>, transform_indices = @transform_8, window_bounds = array<i64: 1, 32>}, {pipeline_mode = #tpu.pipeline_mode<synchronous>, transform_indices = @transform_9, window_bounds = array<i64: 1, 32>}, {pipeline_mode = #tpu.pipeline_mode<synchronous>, transform_indices = @transform_10, window_bounds = array<i64: 32, 32>}, {pipeline_mode = #tpu.pipeline_mode<synchronous>, transform_indices = @transform_11, window_bounds = array<i64: 1, 32>}, {pipeline_mode = #tpu.pipeline_mode<synchronous>, transform_indices = @transform_12, window_bounds = array<i64: 1, 32>}, {pipeline_mode = #tpu.pipeline_mode<synchronous>, transform_indices = @transform_13, window_bounds = array<i64: 1, 32>}, {pipeline_mode = #tpu.pipeline_mode<synchronous>, transform_indices = @transform_14, window_bounds = array<i64: 32, 128>}, {pipeline_mode = #tpu.pipeline_mode<synchronous>, transform_indices = @transform_15, window_bounds = array<i64: 1, 128>}, {pipeline_mode = #tpu.pipeline_mode<synchronous>, transform_indices = @transform_16, window_bounds = array<i64: 128, 32>}, {pipeline_mode = #tpu.pipeline_mode<synchronous>, transform_indices = @transform_17, window_bounds = array<i64: 1, 32>}, {transform_indices = @transform_18, window_bounds = array<i64: 1, 8, 32>}]} {
    %c8_i32 = arith.constant 8 : i32
    %0 = arith.muli %arg1, %c8_i32 : i32
    %c0 = arith.constant 0 : index
    %c0_0 = arith.constant 0 : index
    %c0_1 = arith.constant 0 : index
    %1 = vector.load %arg2[%c0, %c0_0, %c0_1] : memref<1x8x32xf32, #tpu.memory_space<vmem>>, vector<1x8x32xf32>
    %2 = vector.shape_cast %1 : vector<1x8x32xf32> to vector<8x32xf32>
    %c0_2 = arith.constant 0 : index
    %c0_3 = arith.constant 0 : index
    %c0_4 = arith.constant 0 : index
    %3 = vector.load %arg3[%c0_2, %c0_3, %c0_4] : memref<1x8x32xf32, #tpu.memory_space<vmem>>, vector<1x8x32xf32>
    %4 = vector.shape_cast %3 : vector<1x8x32xf32> to vector<8x32xf32>
    %c0_5 = arith.constant 0 : index
    %c0_6 = arith.constant 0 : index
    %5 = vector.load %arg4[%c0_5, %c0_6] : memref<1x32xf32, #tpu.memory_space<vmem>>, vector<1x32xf32>
    %c0_7 = arith.constant 0 : index
    %c0_8 = arith.constant 0 : index
    %6 = vector.load %arg5[%c0_7, %c0_8] : memref<1x32xf32, #tpu.memory_space<vmem>>, vector<1x32xf32>
    %cst = arith.constant dense<0.000000e+00> : vector<8xf32>
    %7 = vector.multi_reduction <add>, %2, %cst [1] : vector<8x32xf32> to vector<8xf32>
    %8 = vector.shape_cast %7 : vector<8xf32> to vector<8x1xf32>
    %cst_9 = arith.constant 3.200000e+01 : f32
    %9 = vector.broadcast %cst_9 : f32 to vector<8x1xf32>
    %10 = arith.divf %8, %9 : vector<8x1xf32>
    %11 = vector.broadcast %10 : vector<8x1xf32> to vector<8x32xf32>
    %12 = arith.subf %2, %11 : vector<8x32xf32>
    %13 = arith.mulf %12, %12 : vector<8x32xf32>
    %cst_10 = arith.constant dense<0.000000e+00> : vector<8xf32>
    %14 = vector.multi_reduction <add>, %13, %cst_10 [1] : vector<8x32xf32> to vector<8xf32>
    %15 = vector.shape_cast %14 : vector<8xf32> to vector<8x1xf32>
    %cst_11 = arith.constant 3.200000e+01 : f32
    %16 = vector.broadcast %cst_11 : f32 to vector<8x1xf32>
    %17 = arith.divf %15, %16 : vector<8x1xf32>
    %18 = vector.broadcast %10 : vector<8x1xf32> to vector<8x32xf32>
    %19 = arith.subf %2, %18 : vector<8x32xf32>
    %cst_12 = arith.constant 9.99999974E-6 : f32
    %20 = vector.broadcast %cst_12 : f32 to vector<8x1xf32>
    %21 = arith.addf %17, %20 : vector<8x1xf32>
    %22 = math.rsqrt %21 : vector<8x1xf32>
    %23 = vector.broadcast %22 : vector<8x1xf32> to vector<8x32xf32>
    %24 = arith.mulf %19, %23 : vector<8x32xf32>
    %25 = vector.broadcast %5 : vector<1x32xf32> to vector<8x32xf32>
    %26 = arith.mulf %24, %25 : vector<8x32xf32>
    %27 = vector.broadcast %6 : vector<1x32xf32> to vector<8x32xf32>
    %28 = arith.addf %26, %27 : vector<8x32xf32>
    %cst_13 = arith.constant dense<0.000000e+00> : vector<8xf32>
    %29 = vector.multi_reduction <add>, %4, %cst_13 [1] : vector<8x32xf32> to vector<8xf32>
    %30 = vector.shape_cast %29 : vector<8xf32> to vector<8x1xf32>
    %cst_14 = arith.constant 3.200000e+01 : f32
    %31 = vector.broadcast %cst_14 : f32 to vector<8x1xf32>
    %32 = arith.divf %30, %31 : vector<8x1xf32>
    %33 = vector.broadcast %32 : vector<8x1xf32> to vector<8x32xf32>
    %34 = arith.subf %4, %33 : vector<8x32xf32>
    %35 = arith.mulf %34, %34 : vector<8x32xf32>
    %cst_15 = arith.constant dense<0.000000e+00> : vector<8xf32>
    %36 = vector.multi_reduction <add>, %35, %cst_15 [1] : vector<8x32xf32> to vector<8xf32>
    %37 = vector.shape_cast %36 : vector<8xf32> to vector<8x1xf32>
    %cst_16 = arith.constant 3.200000e+01 : f32
    %38 = vector.broadcast %cst_16 : f32 to vector<8x1xf32>
    %39 = arith.divf %37, %38 : vector<8x1xf32>
    %40 = vector.broadcast %32 : vector<8x1xf32> to vector<8x32xf32>
    %41 = arith.subf %4, %40 : vector<8x32xf32>
    %cst_17 = arith.constant 9.99999974E-6 : f32
    %42 = vector.broadcast %cst_17 : f32 to vector<8x1xf32>
    %43 = arith.addf %39, %42 : vector<8x1xf32>
    %44 = math.rsqrt %43 : vector<8x1xf32>
    %45 = vector.broadcast %44 : vector<8x1xf32> to vector<8x32xf32>
    %46 = arith.mulf %41, %45 : vector<8x32xf32>
    %47 = vector.broadcast %5 : vector<1x32xf32> to vector<8x32xf32>
    %48 = arith.mulf %46, %47 : vector<8x32xf32>
    %49 = vector.broadcast %6 : vector<1x32xf32> to vector<8x32xf32>
    %50 = arith.addf %48, %49 : vector<8x32xf32>
    %51 = arith.truncf %28 : vector<8x32xf32> to vector<8x32xbf16>
    %52 = arith.truncf %50 : vector<8x32xf32> to vector<8x32xbf16>
    %c0_18 = arith.constant 0 : index
    %c0_19 = arith.constant 0 : index
    %53 = vector.load %arg6[%c0_18, %c0_19] : memref<32x32xbf16, #tpu.memory_space<vmem>>, vector<32x32xbf16>
    %cst_20 = arith.constant dense<0.000000e+00> : vector<8x32xf32>
    %54 = tpu.matmul %51, %53, %cst_20 {dimension_numbers = #tpu.dot_dimension_numbers<[1], [0], [0], [1], [0, 0, 1, 1], [], []>} : vector<8x32xbf16>, vector<32x32xbf16>, vector<8x32xf32> -> vector<8x32xf32>
    %c0_21 = arith.constant 0 : index
    %c0_22 = arith.constant 0 : index
    %55 = vector.load %arg9[%c0_21, %c0_22] : memref<1x32xf32, #tpu.memory_space<vmem>>, vector<1x32xf32>
    %56 = vector.broadcast %55 : vector<1x32xf32> to vector<8x32xf32>
    %57 = arith.addf %54, %56 : vector<8x32xf32>
    %c0_23 = arith.constant 0 : index
    %c0_24 = arith.constant 0 : index
    %58 = vector.load %arg7[%c0_23, %c0_24] : memref<32x32xbf16, #tpu.memory_space<vmem>>, vector<32x32xbf16>
    %cst_25 = arith.constant dense<0.000000e+00> : vector<8x32xf32>
    %59 = tpu.matmul %52, %58, %cst_25 {dimension_numbers = #tpu.dot_dimension_numbers<[1], [0], [0], [1], [0, 0, 1, 1], [], []>} : vector<8x32xbf16>, vector<32x32xbf16>, vector<8x32xf32> -> vector<8x32xf32>
    %c0_26 = arith.constant 0 : index
    %c0_27 = arith.constant 0 : index
    %60 = vector.load %arg10[%c0_26, %c0_27] : memref<1x32xf32, #tpu.memory_space<vmem>>, vector<1x32xf32>
    %61 = vector.broadcast %60 : vector<1x32xf32> to vector<8x32xf32>
    %62 = arith.addf %59, %61 : vector<8x32xf32>
    %c0_28 = arith.constant 0 : index
    %c0_29 = arith.constant 0 : index
    %63 = vector.load %arg8[%c0_28, %c0_29] : memref<32x32xbf16, #tpu.memory_space<vmem>>, vector<32x32xbf16>
    %cst_30 = arith.constant dense<0.000000e+00> : vector<8x32xf32>
    %64 = tpu.matmul %52, %63, %cst_30 {dimension_numbers = #tpu.dot_dimension_numbers<[1], [0], [0], [1], [0, 0, 1, 1], [], []>} : vector<8x32xbf16>, vector<32x32xbf16>, vector<8x32xf32> -> vector<8x32xf32>
    %c0_31 = arith.constant 0 : index
    %c0_32 = arith.constant 0 : index
    %65 = vector.load %arg11[%c0_31, %c0_32] : memref<1x32xf32, #tpu.memory_space<vmem>>, vector<1x32xf32>
    %66 = vector.broadcast %65 : vector<1x32xf32> to vector<8x32xf32>
    %67 = arith.addf %64, %66 : vector<8x32xf32>
    %cst_33 = arith.constant 0.353553385 : f32
    %68 = vector.broadcast %cst_33 : f32 to vector<8x32xf32>
    %69 = arith.mulf %57, %68 : vector<8x32xf32>
    %70 = vector.shape_cast %69 : vector<8x32xf32> to vector<8x4x8xf32>
    %71 = arith.truncf %70 : vector<8x4x8xf32> to vector<8x4x8xbf16>
    %72 = vector.shape_cast %62 : vector<8x32xf32> to vector<8x4x8xf32>
    %73 = arith.truncf %72 : vector<8x4x8xf32> to vector<8x4x8xbf16>
    %74 = vector.shape_cast %67 : vector<8x32xf32> to vector<8x4x8xf32>
    %75 = arith.truncf %74 : vector<8x4x8xf32> to vector<8x4x8xbf16>
    "tpu.trace_start"() <{level = 10 : i32, message = "qhd,khd->hqk"}> : () -> ()
    %cst_34 = arith.constant dense<0.000000e+00> : vector<4x8x8xf32>
    %76 = tpu.matmul %71, %73, %cst_34 {dimension_numbers = #tpu.dot_dimension_numbers<[2], [2], [0], [0], [0, 1, 0, 0, 1, 0], [1], [1]>} : vector<8x4x8xbf16>, vector<8x4x8xbf16>, vector<4x8x8xf32> -> vector<4x8x8xf32>
    "tpu.trace_stop"() : () -> ()
    %77 = tpu.iota {dimensions = array<i32: 0>} : vector<8x8xi32>
    %78 = vector.broadcast %0 : i32 to vector<8x8xi32>
    %79 = arith.addi %78, %77 : vector<8x8xi32>
    %80 = tpu.iota {dimensions = array<i32: 1>} : vector<8x8xi32>
    %81 = arith.cmpi sgt, %80, %79 : vector<8x8xi32>
    %82 = vector.shape_cast %81 : vector<8x8xi1> to vector<1x8x8xi1>
    %cst_35 = arith.constant -1.000000e+30 : f32
    %83 = vector.shape_cast %82 : vector<1x8x8xi1> to vector<1x8x8xi1>
    %84 = vector.broadcast %83 : vector<1x8x8xi1> to vector<4x8x8xi1>
    %85 = vector.broadcast %cst_35 : f32 to vector<4x8x8xf32>
    %86 = arith.select %84, %85, %76 : vector<4x8x8xi1>, vector<4x8x8xf32>
    %cst_36 = arith.constant dense<0xFF800000> : vector<4x8xf32>
    %87 = vector.multi_reduction <maximumf>, %86, %cst_36 [2] : vector<4x8x8xf32> to vector<4x8xf32>
    %88 = vector.shape_cast %87 : vector<4x8xf32> to vector<4x8x1xf32>
    %89 = vector.broadcast %88 : vector<4x8x1xf32> to vector<4x8x8xf32>
    %90 = arith.subf %86, %89 : vector<4x8x8xf32>
    %91 = math.exp %90 : vector<4x8x8xf32>
    %cst_37 = arith.constant dense<0.000000e+00> : vector<4x8xf32>
    %92 = vector.multi_reduction <add>, %91, %cst_37 [2] : vector<4x8x8xf32> to vector<4x8xf32>
    %93 = vector.shape_cast %92 : vector<4x8xf32> to vector<4x8x1xf32>
    %94 = tpu.reciprocal %93 {approx = true} : vector<4x8x1xf32> -> vector<4x8x1xf32>
    %95 = vector.broadcast %94 : vector<4x8x1xf32> to vector<4x8x8xf32>
    %96 = arith.mulf %91, %95 : vector<4x8x8xf32>
    %97 = arith.truncf %96 : vector<4x8x8xf32> to vector<4x8x8xbf16>
    "tpu.trace_start"() <{level = 10 : i32, message = "hqk,khd->qhd"}> : () -> ()
    %cst_38 = arith.constant dense<0.000000e+00> : vector<4x8x8xf32>
    %98 = tpu.matmul %75, %97, %cst_38 {dimension_numbers = #tpu.dot_dimension_numbers<[0], [2], [2], [1], [0, 1, 0, 2, 1, 1], [1], [0]>} : vector<8x4x8xbf16>, vector<4x8x8xbf16>, vector<4x8x8xf32> -> vector<4x8x8xf32>
    %99 = tpu.transpose %98, [2, 0, 1] : vector<4x8x8xf32> -> vector<8x4x8xf32>
    "tpu.trace_stop"() : () -> ()
    %100 = vector.shape_cast %99 : vector<8x4x8xf32> to vector<8x32xf32>
    %101 = arith.truncf %100 : vector<8x32xf32> to vector<8x32xbf16>
    %c0_39 = arith.constant 0 : index
    %c0_40 = arith.constant 0 : index
    %102 = vector.load %arg12[%c0_39, %c0_40] : memref<32x32xbf16, #tpu.memory_space<vmem>>, vector<32x32xbf16>
    %cst_41 = arith.constant dense<0.000000e+00> : vector<8x32xf32>
    %103 = tpu.matmul %101, %102, %cst_41 {dimension_numbers = #tpu.dot_dimension_numbers<[1], [0], [0], [1], [0, 0, 1, 1], [], []>} : vector<8x32xbf16>, vector<32x32xbf16>, vector<8x32xf32> -> vector<8x32xf32>
    %c0_42 = arith.constant 0 : index
    %c0_43 = arith.constant 0 : index
    %104 = vector.load %arg13[%c0_42, %c0_43] : memref<1x32xf32, #tpu.memory_space<vmem>>, vector<1x32xf32>
    %105 = vector.broadcast %104 : vector<1x32xf32> to vector<8x32xf32>
    %106 = arith.addf %103, %105 : vector<8x32xf32>
    %107 = arith.addf %28, %106 : vector<8x32xf32>
    %c0_44 = arith.constant 0 : index
    %c0_45 = arith.constant 0 : index
    %108 = vector.load %arg14[%c0_44, %c0_45] : memref<1x32xf32, #tpu.memory_space<vmem>>, vector<1x32xf32>
    %c0_46 = arith.constant 0 : index
    %c0_47 = arith.constant 0 : index
    %109 = vector.load %arg15[%c0_46, %c0_47] : memref<1x32xf32, #tpu.memory_space<vmem>>, vector<1x32xf32>
    %cst_48 = arith.constant dense<0.000000e+00> : vector<8xf32>
    %110 = vector.multi_reduction <add>, %107, %cst_48 [1] : vector<8x32xf32> to vector<8xf32>
    %111 = vector.shape_cast %110 : vector<8xf32> to vector<8x1xf32>
    %cst_49 = arith.constant 3.200000e+01 : f32
    %112 = vector.broadcast %cst_49 : f32 to vector<8x1xf32>
    %113 = arith.divf %111, %112 : vector<8x1xf32>
    %114 = vector.broadcast %113 : vector<8x1xf32> to vector<8x32xf32>
    %115 = arith.subf %107, %114 : vector<8x32xf32>
    %116 = arith.mulf %115, %115 : vector<8x32xf32>
    %cst_50 = arith.constant dense<0.000000e+00> : vector<8xf32>
    %117 = vector.multi_reduction <add>, %116, %cst_50 [1] : vector<8x32xf32> to vector<8xf32>
    %118 = vector.shape_cast %117 : vector<8xf32> to vector<8x1xf32>
    %cst_51 = arith.constant 3.200000e+01 : f32
    %119 = vector.broadcast %cst_51 : f32 to vector<8x1xf32>
    %120 = arith.divf %118, %119 : vector<8x1xf32>
    %121 = vector.broadcast %113 : vector<8x1xf32> to vector<8x32xf32>
    %122 = arith.subf %107, %121 : vector<8x32xf32>
    %cst_52 = arith.constant 9.99999974E-6 : f32
    %123 = vector.broadcast %cst_52 : f32 to vector<8x1xf32>
    %124 = arith.addf %120, %123 : vector<8x1xf32>
    %125 = math.rsqrt %124 : vector<8x1xf32>
    %126 = vector.broadcast %125 : vector<8x1xf32> to vector<8x32xf32>
    %127 = arith.mulf %122, %126 : vector<8x32xf32>
    %128 = vector.broadcast %108 : vector<1x32xf32> to vector<8x32xf32>
    %129 = arith.mulf %127, %128 : vector<8x32xf32>
    %130 = vector.broadcast %109 : vector<1x32xf32> to vector<8x32xf32>
    %131 = arith.addf %129, %130 : vector<8x32xf32>
    %132 = arith.truncf %131 : vector<8x32xf32> to vector<8x32xbf16>
    %c0_53 = arith.constant 0 : index
    %c0_54 = arith.constant 0 : index
    %133 = vector.load %arg16[%c0_53, %c0_54] : memref<32x128xbf16, #tpu.memory_space<vmem>>, vector<32x128xbf16>
    %cst_55 = arith.constant dense<0.000000e+00> : vector<8x128xf32>
    %134 = tpu.matmul %132, %133, %cst_55 {dimension_numbers = #tpu.dot_dimension_numbers<[1], [0], [0], [1], [0, 0, 1, 1], [], []>} : vector<8x32xbf16>, vector<32x128xbf16>, vector<8x128xf32> -> vector<8x128xf32>
    %c0_56 = arith.constant 0 : index
    %c0_57 = arith.constant 0 : index
    %135 = vector.load %arg17[%c0_56, %c0_57] : memref<1x128xf32, #tpu.memory_space<vmem>>, vector<1x128xf32>
    %136 = vector.broadcast %135 : vector<1x128xf32> to vector<8x128xf32>
    %137 = arith.addf %134, %136 : vector<8x128xf32>
    %cst_58 = arith.constant 5.000000e-01 : f32
    %138 = vector.broadcast %cst_58 : f32 to vector<8x128xf32>
    %139 = arith.mulf %138, %137 : vector<8x128xf32>
    %cst_59 = arith.constant 0.707106769 : f32
    %140 = vector.broadcast %cst_59 : f32 to vector<8x128xf32>
    %141 = arith.mulf %137, %140 : vector<8x128xf32>
    %142 = math.erf %141 : vector<8x128xf32>
    %cst_60 = arith.constant 1.000000e+00 : f32
    %143 = vector.broadcast %cst_60 : f32 to vector<8x128xf32>
    %144 = arith.addf %143, %142 : vector<8x128xf32>
    %145 = arith.mulf %139, %144 : vector<8x128xf32>
    %146 = arith.truncf %145 : vector<8x128xf32> to vector<8x128xbf16>
    %c0_61 = arith.constant 0 : index
    %c0_62 = arith.constant 0 : index
    %147 = vector.load %arg18[%c0_61, %c0_62] : memref<128x32xbf16, #tpu.memory_space<vmem>>, vector<128x32xbf16>
    %cst_63 = arith.constant dense<0.000000e+00> : vector<8x32xf32>
    %148 = tpu.matmul %146, %147, %cst_63 {dimension_numbers = #tpu.dot_dimension_numbers<[1], [0], [0], [1], [0, 0, 1, 1], [], []>} : vector<8x128xbf16>, vector<128x32xbf16>, vector<8x32xf32> -> vector<8x32xf32>
    %c0_64 = arith.constant 0 : index
    %c0_65 = arith.constant 0 : index
    %149 = vector.load %arg19[%c0_64, %c0_65] : memref<1x32xf32, #tpu.memory_space<vmem>>, vector<1x32xf32>
    %150 = vector.broadcast %149 : vector<1x32xf32> to vector<8x32xf32>
    %151 = arith.addf %148, %150 : vector<8x32xf32>
    %152 = arith.addf %107, %151 : vector<8x32xf32>
    %c0_66 = arith.constant 0 : index
    %c0_67 = arith.constant 0 : index
    %c0_68 = arith.constant 0 : index
    %153 = vector.load %arg20[%c0_66, %c0_67, %c0_68] : memref<1x8x32xf32, #tpu.memory_space<vmem>>, vector<1x8x32xf32>
    %154 = vector.shape_cast %153 : vector<1x8x32xf32> to vector<8x32xf32>
    %155 = vector.shape_cast %152 : vector<8x32xf32> to vector<1x8x32xf32>
    tpu.vector_store %arg20[%c0_66, %c0_67, %c0_68], %155 {strides = array<i32>} : memref<1x8x32xf32, #tpu.memory_space<vmem>>, vector<1x8x32xf32>,
    return
  }
  func.func @transform_0(%arg0: i32, %arg1: i32) -> (i32, i32, i32) {
    %c0_i32 = arith.constant 0 : i32
    %c0_i32_0 = arith.constant 0 : i32
    return %arg0, %arg1, %c0_i32 : i32, i32, i32
  }
  func.func @transform_1(%arg0: i32, %arg1: i32) -> (i32, i32, i32) {
    %c0_i32 = arith.constant 0 : i32
    %c0_i32_0 = arith.constant 0 : i32
    %c0_i32_1 = arith.constant 0 : i32
    return %arg0, %c0_i32, %c0_i32_0 : i32, i32, i32
  }
  func.func @transform_2(%arg0: i32, %arg1: i32) -> (i32, i32) {
    %c0_i32 = arith.constant 0 : i32
    %c0_i32_0 = arith.constant 0 : i32
    %c0_i32_1 = arith.constant 0 : i32
    return %c0_i32, %c0_i32_0 : i32, i32
  }
  func.func @transform_3(%arg0: i32, %arg1: i32) -> (i32, i32) {
    %c0_i32 = arith.constant 0 : i32
    %c0_i32_0 = arith.constant 0 : i32
    %c0_i32_1 = arith.constant 0 : i32
    return %c0_i32, %c0_i32_0 : i32, i32
  }
  func.func @transform_4(%arg0: i32, %arg1: i32) -> (i32, i32) {
    %c0_i32 = arith.constant 0 : i32
    %c0_i32_0 = arith.constant 0 : i32
    %c0_i32_1 = arith.constant 0 : i32
    return %c0_i32, %c0_i32_0 : i32, i32
  }
  func.func @transform_5(%arg0: i32, %arg1: i32) -> (i32, i32) {
    %c0_i32 = arith.constant 0 : i32
    %c0_i32_0 = arith.constant 0 : i32
    %c0_i32_1 = arith.constant 0 : i32
    return %c0_i32, %c0_i32_0 : i32, i32
  }
  func.func @transform_6(%arg0: i32, %arg1: i32) -> (i32, i32) {
    %c0_i32 = arith.constant 0 : i32
    %c0_i32_0 = arith.constant 0 : i32
    %c0_i32_1 = arith.constant 0 : i32
    return %c0_i32, %c0_i32_0 : i32, i32
  }
  func.func @transform_7(%arg0: i32, %arg1: i32) -> (i32, i32) {
    %c0_i32 = arith.constant 0 : i32
    %c0_i32_0 = arith.constant 0 : i32
    %c0_i32_1 = arith.constant 0 : i32
    return %c0_i32, %c0_i32_0 : i32, i32
  }
  func.func @transform_8(%arg0: i32, %arg1: i32) -> (i32, i32) {
    %c0_i32 = arith.constant 0 : i32
    %c0_i32_0 = arith.constant 0 : i32
    %c0_i32_1 = arith.constant 0 : i32
    return %c0_i32, %c0_i32_0 : i32, i32
  }
  func.func @transform_9(%arg0: i32, %arg1: i32) -> (i32, i32) {
    %c0_i32 = arith.constant 0 : i32
    %c0_i32_0 = arith.constant 0 : i32
    %c0_i32_1 = arith.constant 0 : i32
    return %c0_i32, %c0_i32_0 : i32, i32
  }
  func.func @transform_10(%arg0: i32, %arg1: i32) -> (i32, i32) {
    %c0_i32 = arith.constant 0 : i32
    %c0_i32_0 = arith.constant 0 : i32
    %c0_i32_1 = arith.constant 0 : i32
    return %c0_i32, %c0_i32_0 : i32, i32
  }
  func.func @transform_11(%arg0: i32, %arg1: i32) -> (i32, i32) {
    %c0_i32 = arith.constant 0 : i32
    %c0_i32_0 = arith.constant 0 : i32
    %c0_i32_1 = arith.constant 0 : i32
    return %c0_i32, %c0_i32_0 : i32, i32
  }
  func.func @transform_12(%arg0: i32, %arg1: i32) -> (i32, i32) {
    %c0_i32 = arith.constant 0 : i32
    %c0_i32_0 = arith.constant 0 : i32
    %c0_i32_1 = arith.constant 0 : i32
    return %c0_i32, %c0_i32_0 : i32, i32
  }
  func.func @transform_13(%arg0: i32, %arg1: i32) -> (i32, i32) {
    %c0_i32 = arith.constant 0 : i32
    %c0_i32_0 = arith.constant 0 : i32
    %c0_i32_1 = arith.constant 0 : i32
    return %c0_i32, %c0_i32_0 : i32, i32
  }
  func.func @transform_14(%arg0: i32, %arg1: i32) -> (i32, i32) {
    %c0_i32 = arith.constant 0 : i32
    %c0_i32_0 = arith.constant 0 : i32
    %c0_i32_1 = arith.constant 0 : i32
    return %c0_i32, %c0_i32_0 : i32, i32
  }
  func.func @transform_15(%arg0: i32, %arg1: i32) -> (i32, i32) {
    %c0_i32 = arith.constant 0 : i32
    %c0_i32_0 = arith.constant 0 : i32
    %c0_i32_1 = arith.constant 0 : i32
    return %c0_i32, %c0_i32_0 : i32, i32
  }
  func.func @transform_16(%arg0: i32, %arg1: i32) -> (i32, i32) {
    %c0_i32 = arith.constant 0 : i32
    %c0_i32_0 = arith.constant 0 : i32
    %c0_i32_1 = arith.constant 0 : i32
    return %c0_i32, %c0_i32_0 : i32, i32
  }
  func.func @transform_17(%arg0: i32, %arg1: i32) -> (i32, i32) {
    %c0_i32 = arith.constant 0 : i32
    %c0_i32_0 = arith.constant 0 : i32
    %c0_i32_1 = arith.constant 0 : i32
    return %c0_i32, %c0_i32_0 : i32, i32
  }
  func.func @transform_18(%arg0: i32, %arg1: i32) -> (i32, i32, i32) {
    %c0_i32 = arith.constant 0 : i32
    %c0_i32_0 = arith.constant 0 : i32
    return %arg0, %arg1, %c0_i32 : i32, i32, i32
  }
}

</mosaic_0001>

<llo_original>
// kernel: tpu_custom_call.1
$region0: #{tpu_custom_call.1}
  #allocation0 [shape = 'u32[]', space=smem, size = 0x4, offset = 0x4, fixed_abs, tag = 'smem constant byte address 0x4 - core index']
  #allocation1 [shape = 'u32[72,128]{1,0:T(1,128)}', space=vmem, size = 0x9000, scoped, tag = 'internal scratch']
  %s0 = inlined_call_operand.vmem [shape: f32[2,8,32], index: 0, kind: input, shape index: {}]
  %s1 = inlined_call_operand.vmem [shape: f32[2,8,32], index: 1, kind: input, shape index: {}]
  %s2 = inlined_call_operand.vmem [shape: f32[1,32], index: 2, kind: input, shape index: {}]
  %s3 = inlined_call_operand.vmem [shape: f32[1,32], index: 3, kind: input, shape index: {}]
  %s4 = inlined_call_operand.vmem [shape: bf16[32,32], index: 4, kind: input, shape index: {}]
  %s5 = inlined_call_operand.vmem [shape: bf16[32,32], index: 5, kind: input, shape index: {}]
  %s6 = inlined_call_operand.vmem [shape: bf16[32,32], index: 6, kind: input, shape index: {}]
  %s7 = inlined_call_operand.vmem [shape: f32[1,32], index: 7, kind: input, shape index: {}]
  %s8 = inlined_call_operand.vmem [shape: f32[1,32], index: 8, kind: input, shape index: {}]
  %s9 = inlined_call_operand.vmem [shape: f32[1,32], index: 9, kind: input, shape index: {}]
  %s10 = inlined_call_operand.hbm [shape: bf16[32,32], index: 10, kind: input, shape index: {}]
  %s11 = inlined_call_operand.vmem [shape: f32[1,32], index: 11, kind: input, shape index: {}]
  %s12 = inlined_call_operand.vmem [shape: f32[1,32], index: 12, kind: input, shape index: {}]
  %s13 = inlined_call_operand.vmem [shape: f32[1,32], index: 13, kind: input, shape index: {}]
  %s14 = inlined_call_operand.hbm [shape: bf16[32,128], index: 14, kind: input, shape index: {}]
  %s15 = inlined_call_operand.vmem [shape: f32[1,128], index: 15, kind: input, shape index: {}]
  %s16 = inlined_call_operand.vmem [shape: bf16[128,32], index: 16, kind: input, shape index: {}]
  %s17 = inlined_call_operand.vmem [shape: f32[1,32], index: 17, kind: input, shape index: {}]
  %s18 = inlined_call_operand.hbm [shape: f32[2,8,32], index: 18, kind: output, shape index: {}]
  %s19 = sld [smem:[#allocation0]]
  $region113: #{tpu_custom_call.1} parent=0
    _
  %s21 = ssub.s32 1, %s19
  %s22 = scalar_select 0, %s21, %s19
  $region1: #{tpu_custom_call.1} parent=0
    #allocation2 [shape = 'u8[8192]{0}', space=vmem, size = 0x2000, scoped, tag = 'input window, operand 10, single buffered']
    #allocation3 [shape = 's32[2]{0}', space=sflag, size = 0x8, scoped, tag = 'scoped memory for tpu_custom_call.1']
    #allocation4 [shape = 's32[2]{0}', space=sflag, size = 0x8, scoped, tag = 'scoped memory for tpu_custom_call.1']
    #allocation5 [shape = 'u8[8192]{0}', space=vmem, size = 0x2000, scoped, tag = 'input window, operand 14, single buffered']
    #allocation6 [shape = 's32[1]{0}', space=sflag, size = 0x4, scoped, tag = 'scoped memory for tpu_custom_call.1']
    #allocation7 [shape = 'u8[8192]{0}', space=vmem, size = 0x2000, scoped, tag = 'output window, operand 0']
    %23 = vsyncpa [#allocation3], 0
    %24 = vsyncpa [#allocation6], 0
    %25 = vsyncpa [#allocation4], 0
    %s26 = scalar_lea.sflag [#allocation4], 1
    %27 = vsyncpa %s26, 0
    loop: start=0, step=1, limit=4
    $region2: #{tpu_custom_call.1} parent=1 // loop_pre_header
      _
    $region3: #{tpu_custom_call.1} parent=1 // loop_header
      %s29 = sphi 0, %s33
      %p30 = scmp.ge.s32.totalorder %s29, 4
      %s36 = sphi 0, %s48
      %s37 = sphi 0, %s44
      %s38 = sphi 0, %s36
      %s39 = sphi 0, %s37
      %s40 = sphi 0, %s38
      %s41 = sphi 0, %s39
      %s53 = sphi 0, %s55
      %s56 = sphi 0, %s53
      %s57 = sphi 0, %s56
      %s73 = sphi 0, %s57
      %s79 = sphi 0, %s81
      %s82 = sphi 0, %s79
      %s83 = sphi 0, %s82
      %s99 = sphi 0, %s83
      %s103 = sphi 0, %s103
      %s105 = sphi 0, %s103
      %s106 = sphi 0, %s105
      %s120 = sphi 0, %s106
      %s124 = sphi 0, %s124
      %s126 = sphi 0, %s124
      %s127 = sphi 0, %s126
      %s141 = sphi 0, %s127
      %s145 = sphi 0, %s145
      %s147 = sphi 0, %s145
      %s148 = sphi 0, %s147
      %s162 = sphi 0, %s148
      %s166 = sphi 0, %s166
      %s168 = sphi 0, %s166
      %s169 = sphi 0, %s168
      %s183 = sphi 0, %s169
      %s187 = sphi 0, %s187
      %s189 = sphi 0, %s187
      %s190 = sphi 0, %s189
      %s204 = sphi 0, %s190
      %s208 = sphi 0, %s208
      %s210 = sphi 0, %s208
      %s211 = sphi 0, %s210
      %s225 = sphi 0, %s211
      %s229 = sphi 0, %s229
      %s231 = sphi 0, %s229
      %s232 = sphi 0, %s231
      %s246 = sphi 0, %s232
      %s250 = sphi 0, %s250
      %s252 = sphi 0, %s250
      %s253 = sphi 0, %s252
      %s267 = sphi 0, %s253
      %s271 = sphi 0, %s271
      %s273 = sphi 0, %s271
      %s274 = sphi 0, %s273
      %s288 = sphi 0, %s274
      %s292 = sphi 0, %s292
      %s294 = sphi 0, %s292
      %s295 = sphi 0, %s294
      %s309 = sphi 0, %s295
      %s313 = sphi 0, %s313
      %s315 = sphi 0, %s313
      %s316 = sphi 0, %s315
      %s330 = sphi 0, %s316
      %s334 = sphi 0, %s334
      %s336 = sphi 0, %s334
      %s337 = sphi 0, %s336
      %s351 = sphi 0, %s337
      %s355 = sphi 0, %s355
      %s357 = sphi 0, %s355
      %s358 = sphi 0, %s357
      %s372 = sphi 0, %s358
      %s376 = sphi 0, %s376
      %s378 = sphi 0, %s376
      %s379 = sphi 0, %s378
      %s393 = sphi 0, %s379
      %s397 = sphi 0, %s397
      %s399 = sphi 0, %s397
      %s400 = sphi 0, %s399
      %s414 = sphi 0, %s400
      %s418 = sphi 0, %s418
      %s420 = sphi 0, %s418
      %s421 = sphi 0, %s420
      %s435 = sphi 0, %s421
      %s443 = sphi 0, %s445
      %s446 = sphi 0, %s443
      %s447 = sphi 0, %s446
      %s463 = sphi 0, %s447
    $region4: #{tpu_custom_call.1} parent=1 // loop_header_branch
      %32 = sbr.rel (%p30) target = $region8
    $region5: #{tpu_custom_call.1} parent=1 // loop_body
      %s34 = ssub.s32 %s29, 1
      %s35 = ssub.s32 %s29, 2
      %s42 = sadd.s32 1, %s37
      %p43 = scmp.ge.s32.totalorder %s42, 1
      %s44 = scalar_select %p43, 0, %s42
      %s45 = sadd.s32 1, %s36
      %s46 = scalar_select %p43, %s45, %s36
      %p47 = scmp.ge.s32.totalorder %s46, 2
      %s48 = scalar_select %p47, 0, %s46
      %s49 = ssub.s32 %s36, %s48
      %s50 = ssub.s32 %s37, %s44
      %s51 = sor.u32 %s49, %s50
      %p52 = scmp.eq.s32.totalorder %s51, 0
      %s54 = sadd.s32 %s53, 1
      %s55 = scalar_select %p52, %s53, %s54
      %p58 = pneg %p52
      %p59 = scmp.eq.s32.totalorder %s29, 1
      %p60 = por %p58, %p59
      %p61 = scmp.ne.s32.totalorder %s53, %s56
      %p62 = scmp.eq.s32.totalorder %s29, 0
      %p63 = por %p61, %p62
      %p64 = scmp.ne.s32.totalorder %s53, %s56
      %p65 = scmp.eq.s32.totalorder %s34, 1
      %p66 = por %p64, %p65
      %p67 = scmp.ne.s32.totalorder %s56, %s57
      %p68 = scmp.eq.s32.totalorder %s34, 0
      %p69 = por %p67, %p68
      %p70 = scmp.ne.s32.totalorder %s56, %s57
      %p71 = scmp.eq.s32.totalorder %s35, 1
      %p72 = por %p70, %p71
      %p74 = scmp.ne.s32.totalorder %s57, %s73
      %p75 = scmp.eq.s32.totalorder %s35, 0
      %p76 = por %p74, %p75
      %s77 = ssub.s32 %s36, %s48
      %p78 = scmp.eq.s32.totalorder %s77, 0
      %s80 = sadd.s32 %s79, 1
      %s81 = scalar_select %p78, %s79, %s80
      %p84 = pneg %p78
      %p85 = scmp.eq.s32.totalorder %s29, 1
      %p86 = por %p84, %p85
      %p87 = scmp.ne.s32.totalorder %s79, %s82
      %p88 = scmp.eq.s32.totalorder %s29, 0
      %p89 = por %p87, %p88
      %p90 = scmp.ne.s32.totalorder %s79, %s82
      %p91 = scmp.eq.s32.totalorder %s34, 1
      %p92 = por %p90, %p91
      %p93 = scmp.ne.s32.totalorder %s82, %s83
      %p94 = scmp.eq.s32.totalorder %s34, 0
      %p95 = por %p93, %p94
      %p96 = scmp.ne.s32.totalorder %s82, %s83
      %p97 = scmp.eq.s32.totalorder %s35, 1
      %p98 = por %p96, %p97
      %p100 = scmp.ne.s32.totalorder %s83, %s99
      %p101 = scmp.eq.s32.totalorder %s35, 0
      %p102 = por %p100, %p101
      %s104 = sadd.s32 %s103, 1
      %p107 = scmp.eq.s32.totalorder %s29, 1
      %p108 = scmp.ne.s32.totalorder %s103, %s105
      %p109 = scmp.eq.s32.totalorder %s29, 0
      %p110 = por %p108, %p109
      %p111 = scmp.ne.s32.totalorder %s103, %s105
      %p112 = scmp.eq.s32.totalorder %s34, 1
      %p113 = por %p111, %p112
      %p114 = scmp.ne.s32.totalorder %s105, %s106
      %p115 = scmp.eq.s32.totalorder %s34, 0
      %p116 = por %p114, %p115
      %p117 = scmp.ne.s32.totalorder %s105, %s106
      %p118 = scmp.eq.s32.totalorder %s35, 1
      %p119 = por %p117, %p118
      %p121 = scmp.ne.s32.totalorder %s106, %s120
      %p122 = scmp.eq.s32.totalorder %s35, 0
      %p123 = por %p121, %p122
      %s125 = sadd.s32 %s124, 1
      %p128 = scmp.eq.s32.totalorder %s29, 1
      %p129 = scmp.ne.s32.totalorder %s124, %s126
      %p130 = scmp.eq.s32.totalorder %s29, 0
      %p131 = por %p129, %p130
      %p132 = scmp.ne.s32.totalorder %s124, %s126
      %p133 = scmp.eq.s32.totalorder %s34, 1
      %p134 = por %p132, %p133
      %p135 = scmp.ne.s32.totalorder %s126, %s127
      %p136 = scmp.eq.s32.totalorder %s34, 0
      %p137 = por %p135, %p136
      %p138 = scmp.ne.s32.totalorder %s126, %s127
      %p139 = scmp.eq.s32.totalorder %s35, 1
      %p140 = por %p138, %p139
      %p142 = scmp.ne.s32.totalorder %s127, %s141
      %p143 = scmp.eq.s32.totalorder %s35, 0
      %p144 = por %p142, %p143
      %s146 = sadd.s32 %s145, 1
      %p149 = scmp.eq.s32.totalorder %s29, 1
      %p150 = scmp.ne.s32.totalorder %s145, %s147
      %p151 = scmp.eq.s32.totalorder %s29, 0
      %p152 = por %p150, %p151
      %p153 = scmp.ne.s32.totalorder %s145, %s147
      %p154 = scmp.eq.s32.totalorder %s34, 1
      %p155 = por %p153, %p154
      %p156 = scmp.ne.s32.totalorder %s147, %s148
      %p157 = scmp.eq.s32.totalorder %s34, 0
      %p158 = por %p156, %p157
      %p159 = scmp.ne.s32.totalorder %s147, %s148
      %p160 = scmp.eq.s32.totalorder %s35, 1
      %p161 = por %p159, %p160
      %p163 = scmp.ne.s32.totalorder %s148, %s162
      %p164 = scmp.eq.s32.totalorder %s35, 0
      %p165 = por %p163, %p164
      %s167 = sadd.s32 %s166, 1
      %p170 = scmp.eq.s32.totalorder %s29, 1
      %p171 = scmp.ne.s32.totalorder %s166, %s168
      %p172 = scmp.eq.s32.totalorder %s29, 0
      %p173 = por %p171, %p172
      %p174 = scmp.ne.s32.totalorder %s166, %s168
      %p175 = scmp.eq.s32.totalorder %s34, 1
      %p176 = por %p174, %p175
      %p177 = scmp.ne.s32.totalorder %s168, %s169
      %p178 = scmp.eq.s32.totalorder %s34, 0
      %p179 = por %p177, %p178
      %p180 = scmp.ne.s32.totalorder %s168, %s169
      %p181 = scmp.eq.s32.totalorder %s35, 1
      %p182 = por %p180, %p181
      %p184 = scmp.ne.s32.totalorder %s169, %s183
      %p185 = scmp.eq.s32.totalorder %s35, 0
      %p186 = por %p184, %p185
      %s188 = sadd.s32 %s187, 1
      %p191 = scmp.eq.s32.totalorder %s29, 1
      %p192 = scmp.ne.s32.totalorder %s187, %s189
      %p193 = scmp.eq.s32.totalorder %s29, 0
      %p194 = por %p192, %p193
      %p195 = scmp.ne.s32.totalorder %s187, %s189
      %p196 = scmp.eq.s32.totalorder %s34, 1
      %p197 = por %p195, %p196
      %p198 = scmp.ne.s32.totalorder %s189, %s190
      %p199 = scmp.eq.s32.totalorder %s34, 0
      %p200 = por %p198, %p199
      %p201 = scmp.ne.s32.totalorder %s189, %s190
      %p202 = scmp.eq.s32.totalorder %s35, 1
      %p203 = por %p201, %p202
      %p205 = scmp.ne.s32.totalorder %s190, %s204
      %p206 = scmp.eq.s32.totalorder %s35, 0
      %p207 = por %p205, %p206
      %s209 = sadd.s32 %s208, 1
      %p212 = scmp.eq.s32.totalorder %s29, 1
      %p213 = scmp.ne.s32.totalorder %s208, %s210
      %p214 = scmp.eq.s32.totalorder %s29, 0
      %p215 = por %p213, %p214
      %p216 = scmp.ne.s32.totalorder %s208, %s210
      %p217 = scmp.eq.s32.totalorder %s34, 1
      %p218 = por %p216, %p217
      %p219 = scmp.ne.s32.totalorder %s210, %s211
      %p220 = scmp.eq.s32.totalorder %s34, 0
      %p221 = por %p219, %p220
      %p222 = scmp.ne.s32.totalorder %s210, %s211
      %p223 = scmp.eq.s32.totalorder %s35, 1
      %p224 = por %p222, %p223
      %p226 = scmp.ne.s32.totalorder %s211, %s225
      %p227 = scmp.eq.s32.totalorder %s35, 0
      %p228 = por %p226, %p227
      %s230 = sadd.s32 %s229, 1
      %p233 = scmp.eq.s32.totalorder %s29, 1
      %p234 = scmp.ne.s32.totalorder %s229, %s231
      %p235 = scmp.eq.s32.totalorder %s29, 0
      %p236 = por %p234, %p235
      %p237 = scmp.ne.s32.totalorder %s229, %s231
      %p238 = scmp.eq.s32.totalorder %s34, 1
      %p239 = por %p237, %p238
      %p240 = scmp.ne.s32.totalorder %s231, %s232
      %p241 = scmp.eq.s32.totalorder %s34, 0
      %p242 = por %p240, %p241
      %p243 = scmp.ne.s32.totalorder %s231, %s232
      %p244 = scmp.eq.s32.totalorder %s35, 1
      %p245 = por %p243, %p244
      %p247 = scmp.ne.s32.totalorder %s232, %s246
      %p248 = scmp.eq.s32.totalorder %s35, 0
      %p249 = por %p247, %p248
      %s251 = sadd.s32 %s250, 1
      %p254 = scmp.eq.s32.totalorder %s29, 1
      %p255 = scmp.ne.s32.totalorder %s250, %s252
      %p256 = scmp.eq.s32.totalorder %s29, 0
      %p257 = por %p255, %p256
      %p258 = scmp.ne.s32.totalorder %s250, %s252
      %p259 = scmp.eq.s32.totalorder %s34, 1
      %p260 = por %p258, %p259
      %p261 = scmp.ne.s32.totalorder %s252, %s253
      %p262 = scmp.eq.s32.totalorder %s34, 0
      %p263 = por %p261, %p262
      %p264 = scmp.ne.s32.totalorder %s252, %s253
      %p265 = scmp.eq.s32.totalorder %s35, 1
      %p266 = por %p264, %p265
      %p268 = scmp.ne.s32.totalorder %s253, %s267
      %p269 = scmp.eq.s32.totalorder %s35, 0
      %p270 = por %p268, %p269
      %s272 = sadd.s32 %s271, 1
      %p275 = scmp.eq.s32.totalorder %s29, 1
      %p276 = scmp.ne.s32.totalorder %s271, %s273
      %p277 = scmp.eq.s32.totalorder %s29, 0
      %p278 = por %p276, %p277
      %p279 = scmp.ne.s32.totalorder %s271, %s273
      %p280 = scmp.eq.s32.totalorder %s34, 1
      %p281 = por %p279, %p280
      %p282 = scmp.ne.s32.totalorder %s273, %s274
      %p283 = scmp.eq.s32.totalorder %s34, 0
      %p284 = por %p282, %p283
      %p285 = scmp.ne.s32.totalorder %s273, %s274
      %p286 = scmp.eq.s32.totalorder %s35, 1
      %p287 = por %p285, %p286
      %p289 = scmp.ne.s32.totalorder %s274, %s288
      %p290 = scmp.eq.s32.totalorder %s35, 0
      %p291 = por %p289, %p290
      %s293 = sadd.s32 %s292, 1
      %p296 = scmp.eq.s32.totalorder %s29, 1
      %p297 = scmp.ne.s32.totalorder %s292, %s294
      %p298 = scmp.eq.s32.totalorder %s29, 0
      %p299 = por %p297, %p298
      %p300 = scmp.ne.s32.totalorder %s292, %s294
      %p301 = scmp.eq.s32.totalorder %s34, 1
      %p302 = por %p300, %p301
      %p303 = scmp.ne.s32.totalorder %s294, %s295
      %p304 = scmp.eq.s32.totalorder %s34, 0
      %p305 = por %p303, %p304
      %p306 = scmp.ne.s32.totalorder %s294, %s295
      %p307 = scmp.eq.s32.totalorder %s35, 1
      %p308 = por %p306, %p307
      %p310 = scmp.ne.s32.totalorder %s295, %s309
      %p311 = scmp.eq.s32.totalorder %s35, 0
      %p312 = por %p310, %p311
      %s314 = sadd.s32 %s313, 1
      %p317 = scmp.eq.s32.totalorder %s29, 1
      %p318 = scmp.ne.s32.totalorder %s313, %s315
      %p319 = scmp.eq.s32.totalorder %s29, 0
      %p320 = por %p318, %p319
      %p321 = scmp.ne.s32.totalorder %s313, %s315
      %p322 = scmp.eq.s32.totalorder %s34, 1
      %p323 = por %p321, %p322
      %p324 = scmp.ne.s32.totalorder %s315, %s316
      %p325 = scmp.eq.s32.totalorder %s34, 0
      %p326 = por %p324, %p325
      %p327 = scmp.ne.s32.totalorder %s315, %s316
      %p328 = scmp.eq.s32.totalorder %s35, 1
      %p329 = por %p327, %p328
      %p331 = scmp.ne.s32.totalorder %s316, %s330
      %p332 = scmp.eq.s32.totalorder %s35, 0
      %p333 = por %p331, %p332
      %s335 = sadd.s32 %s334, 1
      %p338 = scmp.eq.s32.totalorder %s29, 1
      %p339 = scmp.ne.s32.totalorder %s334, %s336
      %p340 = scmp.eq.s32.totalorder %s29, 0
      %p341 = por %p339, %p340
      %p342 = scmp.ne.s32.totalorder %s334, %s336
      %p343 = scmp.eq.s32.totalorder %s34, 1
      %p344 = por %p342, %p343
      %p345 = scmp.ne.s32.totalorder %s336, %s337
      %p346 = scmp.eq.s32.totalorder %s34, 0
      %p347 = por %p345, %p346
      %p348 = scmp.ne.s32.totalorder %s336, %s337
      %p349 = scmp.eq.s32.totalorder %s35, 1
      %p350 = por %p348, %p349
      %p352 = scmp.ne.s32.totalorder %s337, %s351
      %p353 = scmp.eq.s32.totalorder %s35, 0
      %p354 = por %p352, %p353
      %s356 = sadd.s32 %s355, 1
      %p359 = scmp.eq.s32.totalorder %s29, 1
      %p360 = scmp.ne.s32.totalorder %s355, %s357
      %p361 = scmp.eq.s32.totalorder %s29, 0
      %p362 = por %p360, %p361
      %p363 = scmp.ne.s32.totalorder %s355, %s357
      %p364 = scmp.eq.s32.totalorder %s34, 1
      %p365 = por %p363, %p364
      %p366 = scmp.ne.s32.totalorder %s357, %s358
      %p367 = scmp.eq.s32.totalorder %s34, 0
      %p368 = por %p366, %p367
      %p369 = scmp.ne.s32.totalorder %s357, %s358
      %p370 = scmp.eq.s32.totalorder %s35, 1
      %p371 = por %p369, %p370
      %p373 = scmp.ne.s32.totalorder %s358, %s372
      %p374 = scmp.eq.s32.totalorder %s35, 0
      %p375 = por %p373, %p374
      %s377 = sadd.s32 %s376, 1
      %p380 = scmp.eq.s32.totalorder %s29, 1
      %p381 = scmp.ne.s32.totalorder %s376, %s378
      %p382 = scmp.eq.s32.totalorder %s29, 0
      %p383 = por %p381, %p382
      %p384 = scmp.ne.s32.totalorder %s376, %s378
      %p385 = scmp.eq.s32.totalorder %s34, 1
      %p386 = por %p384, %p385
      %p387 = scmp.ne.s32.totalorder %s378, %s379
      %p388 = scmp.eq.s32.totalorder %s34, 0
      %p389 = por %p387, %p388
      %p390 = scmp.ne.s32.totalorder %s378, %s379
      %p391 = scmp.eq.s32.totalorder %s35, 1
      %p392 = por %p390, %p391
      %p394 = scmp.ne.s32.totalorder %s379, %s393
      %p395 = scmp.eq.s32.totalorder %s35, 0
      %p396 = por %p394, %p395
      %s398 = sadd.s32 %s397, 1
      %p401 = scmp.eq.s32.totalorder %s29, 1
      %p402 = scmp.ne.s32.totalorder %s397, %s399
      %p403 = scmp.eq.s32.totalorder %s29, 0
      %p404 = por %p402, %p403
      %p405 = scmp.ne.s32.totalorder %s397, %s399
      %p406 = scmp.eq.s32.totalorder %s34, 1
      %p407 = por %p405, %p406
      %p408 = scmp.ne.s32.totalorder %s399, %s400
      %p409 = scmp.eq.s32.totalorder %s34, 0
      %p410 = por %p408, %p409
      %p411 = scmp.ne.s32.totalorder %s399, %s400
      %p412 = scmp.eq.s32.totalorder %s35, 1
      %p413 = por %p411, %p412
      %p415 = scmp.ne.s32.totalorder %s400, %s414
      %p416 = scmp.eq.s32.totalorder %s35, 0
      %p417 = por %p415, %p416
      %s419 = sadd.s32 %s418, 1
      %p422 = scmp.eq.s32.totalorder %s29, 1
      %p423 = scmp.ne.s32.totalorder %s418, %s420
      %p424 = scmp.eq.s32.totalorder %s29, 0
      %p425 = por %p423, %p424
      %p426 = scmp.ne.s32.totalorder %s418, %s420
      %p427 = scmp.eq.s32.totalorder %s34, 1
      %p428 = por %p426, %p427
      %p429 = scmp.ne.s32.totalorder %s420, %s421
      %p430 = scmp.eq.s32.totalorder %s34, 0
      %p431 = por %p429, %p430
      %p432 = scmp.ne.s32.totalorder %s420, %s421
      %p433 = scmp.eq.s32.totalorder %s35, 1
      %p434 = por %p432, %p433
      %p436 = scmp.ne.s32.totalorder %s421, %s435
      %p437 = scmp.eq.s32.totalorder %s35, 0
      %p438 = por %p436, %p437
      %s439 = ssub.s32 %s36, %s48
      %s440 = ssub.s32 %s37, %s44
      %s441 = sor.u32 %s439, %s440
      %p442 = scmp.eq.s32.totalorder %s441, 0
      %s444 = sadd.s32 %s443, 1
      %s445 = scalar_select %p442, %s443, %s444
      %p448 = pneg %p442
      %p449 = scmp.eq.s32.totalorder %s29, 1
      %p450 = por %p448, %p449
      %p451 = scmp.ne.s32.totalorder %s443, %s446
      %p452 = scmp.eq.s32.totalorder %s29, 0
      %p453 = por %p451, %p452
      %p454 = scmp.ne.s32.totalorder %s443, %s446
      %p455 = scmp.eq.s32.totalorder %s34, 1
      %p456 = por %p454, %p455
      %p457 = scmp.ne.s32.totalorder %s446, %s447
      %p458 = scmp.eq.s32.totalorder %s34, 0
      %p459 = por %p457, %p458
      %p460 = scmp.ne.s32.totalorder %s446, %s447
      %p461 = scmp.eq.s32.totalorder %s35, 1
      %p462 = por %p460, %p461
      %p464 = scmp.ne.s32.totalorder %s447, %s463
      %p465 = scmp.eq.s32.totalorder %s35, 0
      %p466 = por %p464, %p465
      %p467 = scmp.le.s32.totalorder 1, %s29
      %p468 = scmp.lt.s32.totalorder %s29, 3
      %p469 = pnand %p467, %p468
      %p470 = pneg %p469
      // Predicated region
      $region9: #{tpu_custom_call.1} parent=5 // pred_check
        _
      $region10: #{tpu_custom_call.1} parent=5 // pred_check_branch
        %472 = sbr.rel (%p469) target = $region12
      $region11: #{tpu_custom_call.1} parent=5 // pred_region
        %s473 = ssub.s32 %s29, 1
        // Predicated region
        $region13: #{tpu_custom_call.1} parent=11 // pred_check
          %p474 = pneg %p116
        $region14: #{tpu_custom_call.1} parent=11 // pred_check_branch
          %476 = sbr.rel (%p474) target = $region16
        $region15: #{tpu_custom_call.1} parent=11 // pred_region
          _
        $region16: #{tpu_custom_call.1} parent=11 // pred_fallthru
          _
        // Predicated region
        $region17: #{tpu_custom_call.1} parent=11 // pred_check
          %p477 = pneg %p137
        $region18: #{tpu_custom_call.1} parent=11 // pred_check_branch
          %479 = sbr.rel (%p477) target = $region20
        $region19: #{tpu_custom_call.1} parent=11 // pred_region
          _
        $region20: #{tpu_custom_call.1} parent=11 // pred_fallthru
          _
        // Predicated region
        $region21: #{tpu_custom_call.1} parent=11 // pred_check
          %p480 = pneg %p158
        $region22: #{tpu_custom_call.1} parent=11 // pred_check_branch
          %482 = sbr.rel (%p480) target = $region24
        $region23: #{tpu_custom_call.1} parent=11 // pred_region
          _
        $region24: #{tpu_custom_call.1} parent=11 // pred_fallthru
          _
        // Predicated region
        $region25: #{tpu_custom_call.1} parent=11 // pred_check
          %p483 = pneg %p179
        $region26: #{tpu_custom_call.1} parent=11 // pred_check_branch
          %485 = sbr.rel (%p483) target = $region28
        $region27: #{tpu_custom_call.1} parent=11 // pred_region
          _
        $region28: #{tpu_custom_call.1} parent=11 // pred_fallthru
          _
        // Predicated region
        $region29: #{tpu_custom_call.1} parent=11 // pred_check
          %p486 = pneg %p200
        $region30: #{tpu_custom_call.1} parent=11 // pred_check_branch
          %488 = sbr.rel (%p486) target = $region32
        $region31: #{tpu_custom_call.1} parent=11 // pred_region
          _
        $region32: #{tpu_custom_call.1} parent=11 // pred_fallthru
          _
        // Predicated region
        $region33: #{tpu_custom_call.1} parent=11 // pred_check
          %p489 = pneg %p221
        $region34: #{tpu_custom_call.1} parent=11 // pred_check_branch
          %491 = sbr.rel (%p489) target = $region36
        $region35: #{tpu_custom_call.1} parent=11 // pred_region
          _
        $region36: #{tpu_custom_call.1} parent=11 // pred_fallthru
          _
        // Predicated region
        $region37: #{tpu_custom_call.1} parent=11 // pred_check
          %p492 = pneg %p242
        $region38: #{tpu_custom_call.1} parent=11 // pred_check_branch
          %494 = sbr.rel (%p492) target = $region40
        $region39: #{tpu_custom_call.1} parent=11 // pred_region
          _
        $region40: #{tpu_custom_call.1} parent=11 // pred_fallthru
          _
        // Predicated region
        $region41: #{tpu_custom_call.1} parent=11 // pred_check
          %p495 = pneg %p263
        $region42: #{tpu_custom_call.1} parent=11 // pred_check_branch
          %497 = sbr.rel (%p495) target = $region44
        $region43: #{tpu_custom_call.1} parent=11 // pred_region
          _
        $region44: #{tpu_custom_call.1} parent=11 // pred_fallthru
          _
        // Predicated region
        $region45: #{tpu_custom_call.1} parent=11 // pred_check
          %p498 = pneg %p284
        $region46: #{tpu_custom_call.1} parent=11 // pred_check_branch
          %500 = sbr.rel (%p498) target = $region48
        $region47: #{tpu_custom_call.1} parent=11 // pred_region
          %502 = vsyncadd [#allocation3], 0
          %s503 = sshll.u32 %s10, 4
          %s504 = int_to_ptr.hbm [resolvable:$true] %s503
          %s505 = sshll.u32 [#allocation2], 4
          %s506 = int_to_ptr.vmem [resolvable:$true] %s505
          %511 = dma.hbm_to_vmem [thread:$0]  %s504, 256, %s506, [#allocation3], 64, 64, 4
        $region48: #{tpu_custom_call.1} parent=11 // pred_fallthru
          _
        // Predicated region
        $region49: #{tpu_custom_call.1} parent=11 // pred_check
          %p512 = pneg %p305
        $region50: #{tpu_custom_call.1} parent=11 // pred_check_branch
          %514 = sbr.rel (%p512) target = $region52
        $region51: #{tpu_custom_call.1} parent=11 // pred_region
          _
        $region52: #{tpu_custom_call.1} parent=11 // pred_fallthru
          _
        // Predicated region
        $region53: #{tpu_custom_call.1} parent=11 // pred_check
          %p515 = pneg %p326
        $region54: #{tpu_custom_call.1} parent=11 // pred_check_branch
          %517 = sbr.rel (%p515) target = $region56
        $region55: #{tpu_custom_call.1} parent=11 // pred_region
          _
        $region56: #{tpu_custom_call.1} parent=11 // pred_fallthru
          _
        // Predicated region
        $region57: #{tpu_custom_call.1} parent=11 // pred_check
          %p518 = pneg %p347
        $region58: #{tpu_custom_call.1} parent=11 // pred_check_branch
          %520 = sbr.rel (%p518) target = $region60
        $region59: #{tpu_custom_call.1} parent=11 // pred_region
          _
        $region60: #{tpu_custom_call.1} parent=11 // pred_fallthru
          _
        // Predicated region
        $region61: #{tpu_custom_call.1} parent=11 // pred_check
          %p521 = pneg %p368
        $region62: #{tpu_custom_call.1} parent=11 // pred_check_branch
          %523 = sbr.rel (%p521) target = $region64
        $region63: #{tpu_custom_call.1} parent=11 // pred_region
          %525 = vsyncadd [#allocation6], 0
          %s526 = sshll.u32 %s14, 4
          %s527 = int_to_ptr.hbm [resolvable:$true] %s526
          %s528 = sshll.u32 [#allocation5], 4
          %s529 = int_to_ptr.vmem [resolvable:$true] %s528
          %534 = dma.hbm_to_vmem [thread:$0]  %s527, 256, %s529, [#allocation6], 64, 64, 4
        $region64: #{tpu_custom_call.1} parent=11 // pred_fallthru
          _
        // Predicated region
        $region65: #{tpu_custom_call.1} parent=11 // pred_check
          %p535 = pneg %p389
        $region66: #{tpu_custom_call.1} parent=11 // pred_check_branch
          %537 = sbr.rel (%p535) target = $region68
        $region67: #{tpu_custom_call.1} parent=11 // pred_region
          _
        $region68: #{tpu_custom_call.1} parent=11 // pred_fallthru
          _
        // Predicated region
        $region69: #{tpu_custom_call.1} parent=11 // pred_check
          %p538 = pneg %p410
        $region70: #{tpu_custom_call.1} parent=11 // pred_check_branch
          %540 = sbr.rel (%p538) target = $region72
        $region71: #{tpu_custom_call.1} parent=11 // pred_region
          _
        $region72: #{tpu_custom_call.1} parent=11 // pred_fallthru
          _
        // Predicated region
        $region73: #{tpu_custom_call.1} parent=11 // pred_check
          %p541 = pneg %p431
        $region74: #{tpu_custom_call.1} parent=11 // pred_check_branch
          %543 = sbr.rel (%p541) target = $region76
        $region75: #{tpu_custom_call.1} parent=11 // pred_region
          _
        $region76: #{tpu_custom_call.1} parent=11 // pred_fallthru
          _
      $region12: #{tpu_custom_call.1} parent=5 // pred_fallthru
        _
      %p544 = scmp.lt.s32.totalorder %s29, 2
      // Predicated region
      $region77: #{tpu_custom_call.1} parent=5 // pred_check
        %p545 = pneg %p544
      $region78: #{tpu_custom_call.1} parent=5 // pred_check_branch
        %547 = sbr.rel (%p545) target = $region80
      $region79: #{tpu_custom_call.1} parent=5 // pred_region
        // Predicated region
        $region81: #{tpu_custom_call.1} parent=79 // pred_check
          %p548 = pneg %p63
        $region82: #{tpu_custom_call.1} parent=79 // pred_check_branch
          %550 = sbr.rel (%p548) target = $region84
        $region83: #{tpu_custom_call.1} parent=79 // pred_region
          %p551 = scmp.lt.s32.totalorder %s36, 1
          %s552 = scalar_select %p551, %s36, 1
          %p553 = scmp.lt.s32.totalorder %s37, 0
          %s554 = scalar_select %p553, %s37, 0
          %s555 = sadd.s32 %s554, %s552
          %s556 = smul.addr %s555, 8
          %s557 = scalar_lea.vmem %s0, %s556
        $region84: #{tpu_custom_call.1} parent=79 // pred_fallthru
          _
        // Predicated region
        $region85: #{tpu_custom_call.1} parent=79 // pred_check
          %p558 = pneg %p89
        $region86: #{tpu_custom_call.1} parent=79 // pred_check_branch
          %560 = sbr.rel (%p558) target = $region88
        $region87: #{tpu_custom_call.1} parent=79 // pred_region
          %p561 = scmp.lt.s32.totalorder %s36, 1
          %s562 = scalar_select %p561, %s36, 1
          %s563 = smul.addr %s562, 8
          %s564 = scalar_lea.vmem %s1, %s563
        $region88: #{tpu_custom_call.1} parent=79 // pred_fallthru
          _
      $region80: #{tpu_custom_call.1} parent=5 // pred_fallthru
        _
      %p565 = scmp.le.s32.totalorder 1, %s29
      %p566 = scmp.lt.s32.totalorder %s29, 3
      %p567 = pnand %p565, %p566
      %p568 = pneg %p567
      // Predicated region
      $region89: #{tpu_custom_call.1} parent=5 // pred_check
        _
      $region90: #{tpu_custom_call.1} parent=5 // pred_check_branch
        %570 = sbr.rel (%p567) target = $region92
      $region91: #{tpu_custom_call.1} parent=5 // pred_region
        %s571 = ssub.s32 %s29, 1
        // Predicated region
        $region93: #{tpu_custom_call.1} parent=91 // pred_check
          %p572 = pneg %p284
        $region94: #{tpu_custom_call.1} parent=91 // pred_check_branch
          %574 = sbr.rel (%p572) target = $region96
        $region95: #{tpu_custom_call.1} parent=91 // pred_region
          %576 = dma.done [#allocation3], 256
        $region96: #{tpu_custom_call.1} parent=91 // pred_fallthru
          _
        // Predicated region
        $region97: #{tpu_custom_call.1} parent=91 // pred_check
          %p577 = pneg %p368
        $region98: #{tpu_custom_call.1} parent=91 // pred_check_branch
          %579 = sbr.rel (%p577) target = $region100
        $region99: #{tpu_custom_call.1} parent=91 // pred_region
          %581 = dma.done [#allocation6], 256
        $region100: #{tpu_custom_call.1} parent=91 // pred_fallthru
          _
        %p582 = scmp.lt.s32.totalorder %s38, 1
        %s583 = scalar_select %p582, %s38, 1
        %p584 = scmp.lt.s32.totalorder %s39, 0
        %s585 = scalar_select %p584, %s39, 0
        %s586 = sadd.s32 %s585, %s583
        %s587 = smul.addr %s586, 8
        %s588 = scalar_lea.vmem %s0, %s587
        %p589 = pneg %p69
        %p590 = pneg %p66
        %p591 = scmp.lt.s32.totalorder %s38, 1
        %s592 = scalar_select %p591, %s38, 1
        %s593 = smul.addr %s592, 8
        %s594 = scalar_lea.vmem %s1, %s593
        %p595 = pneg %p95
        %p596 = pneg %p92
        %p597 = pneg %p116
        %p598 = pneg %p113
        %p599 = pneg %p137
        %p600 = pneg %p134
        %p601 = pneg %p158
        %p602 = pneg %p155
        %p603 = pneg %p179
        %p604 = pneg %p176
        %p605 = pneg %p200
        %p606 = pneg %p197
        %p607 = pneg %p221
        %p608 = pneg %p218
        %p609 = pneg %p242
        %p610 = pneg %p239
        %p611 = pneg %p263
        %p612 = pneg %p260
        %p613 = pneg %p284
        %p614 = pneg %p281
        %p615 = pneg %p305
        %p616 = pneg %p302
        %p617 = pneg %p326
        %p618 = pneg %p323
        %p619 = pneg %p347
        %p620 = pneg %p344
        %p621 = pneg %p368
        %p622 = pneg %p365
        %p623 = pneg %p389
        %p624 = pneg %p386
        %p625 = pneg %p410
        %p626 = pneg %p407
        %p627 = pneg %p431
        %p628 = pneg %p428
        %p629 = pneg %p459
        %p630 = pneg %p456
        %s631 = sand.u32 %s446, 1
        %s632 = scalar_lea.sflag [#allocation4], %s631
        %s633 = sand.u32 %s446, 1
        %s634 = smul.addr %s633, 8
        %s635 = scalar_lea.vmem [#allocation7], %s634
        %p636 = scmp.lt.s32.totalorder %s38, 1
        %s637 = scalar_select %p636, %s38, 1
        %p638 = scmp.lt.s32.totalorder %s39, 0
        %s639 = scalar_select %p638, %s39, 0
        %s640 = sadd.s32 %s639, %s637
        %s641 = smul.addr %s640, 8
        %s642 = scalar_lea.vmem %s0, %s641
        %p643 = scmp.lt.s32.totalorder %s38, 1
        %s644 = scalar_select %p643, %s38, 1
        %s645 = smul.addr %s644, 8
        %s646 = scalar_lea.vmem %s1, %s645
        %s648 = smul.u32 %s39, 8
        %v649 = vld [vmem:[%s642] sm:$0xff]
        %v650 = vld [vmem:[%s646] sm:$0xff]
        %v651 = vld [vmem:[%s2] sm:$0x1]
        %v652 = vld [vmem:[%s3] sm:$0x1]
        %vm653 = vcmask 261120
        %v654 = vsel %vm653, %v649, 0.0
        %655 = vadd.xlane.f32.xlu0 %v654
        %v656 = vpop.xlane.xlu0 %655
        %v657 = vrcp.pop 32.0
        %v658 = vmul.f32 32.0, %v657
        %v659 = vsub.f32 1.0, %v658
        %v660 = vmul.f32 %v657, %v659
        %v661 = vadd.f32 %v657, %v660
        %vm662 = vweird.f32 %v657
        %v663 = vsel %vm662, %v657, %v661
        %v664 = vmul.f32 %v656, %v663
        %v665 = vsub.f32 %v649, %v664
        %v666 = vmul.f32 %v665, %v665
        %v667 = vsel %vm653, %v666, 0.0
        %668 = vadd.xlane.f32.xlu0 %v667
        %v669 = vpop.xlane.xlu0 %668
        %v670 = vmul.f32 %v669, %v663
        %v671 = vadd.f32 %v670, 1e-05
        %v672 = vrsqrt.pop %v671
        %v673 = vmul.f32 %v672, %v671
        %v674 = vmul.f32 %v673, %v672
        %v675 = vmul.f32 0.5, %v674
        %v676 = vsub.f32 1.5, %v675
        %v677 = vmul.f32 %v672, %v676
        %vm678 = vweird.f32 %v671
        %vm679 = vweird.f32 %v672
        %vm680 = vmor %vm678, %vm679
        %v681 = vsel %vm680, %v672, %v677
        %v682 = vmul.f32 %v665, %v681
        %v684 = vperm.slane %v651, 0
        %v686 = vmul.f32 %v682, %v684
        %v688 = vperm.slane %v652, 0
        %v690 = vadd.f32 %v686, %v688
        %v691 = vsel %vm653, %v650, 0.0
        %692 = vadd.xlane.f32.xlu0 %v691
        %v693 = vpop.xlane.xlu0 %692
        %v694 = vmul.f32 %v693, %v663
        %v695 = vsub.f32 %v650, %v694
        %v696 = vmul.f32 %v695, %v695
        %v697 = vsel %vm653, %v696, 0.0
        %698 = vadd.xlane.f32.xlu0 %v697
        %v699 = vpop.xlane.xlu0 %698
        %v700 = vmul.f32 %v699, %v663
        %v701 = vadd.f32 %v700, 1e-05
        %v702 = vrsqrt.pop %v701
        %v703 = vmul.f32 %v702, %v701
        %v704 = vmul.f32 %v703, %v702
        %v705 = vmul.f32 0.5, %v704
        %v706 = vsub.f32 1.5, %v705
        %v707 = vmul.f32 %v702, %v706
        %vm708 = vweird.f32 %v701
        %vm709 = vweird.f32 %v702
        %vm710 = vmor %vm708, %vm709
        %v711 = vsel %vm710, %v702, %v707
        %v712 = vmul.f32 %v695, %v711
        %v713 = vmul.f32 %v712, %v684
        %v714 = vadd.f32 %v713, %v688
        %v715 = vpack.c.bf16 %v690, %v690
        %v716 = vpack.c.bf16 %v714, %v714
        %v717 = vld [vmem:[%s4] sm:$0xf]
        %v718 = vld [vmem:[%s4 + $0x4] sm:$0xf]
        %v719 = vld [vmem:[%s4 + $0x8] sm:$0xf]
        %v720 = vld [vmem:[%s4 + $0xc] sm:$0xf]
        %v721 = vld [vmem:[%s7] sm:$0x1]
        %v723 = vperm.slane %v721, 0
        %v729 = vunpack.c.l.b16 %v717
        %v730 = vunpack.c.l.b16 %v718
        %v731 = vunpack.c.l.b16 %v719
        %v732 = vunpack.c.l.b16 %v720
        %v733 = vpack.c.b16 %v730, %v729
        %v734 = vpack.c.b16 %v732, %v731
        %v738 = vsel %vm653, %v715, 0
        %740 = vmatpush.bf16.msra.mxu0 0
        %741 = vmatpush.bf16.msra.mxu0 0
        %742 = vmatpush.bf16.msra.mxu0 0
        %743 = vmatpush.bf16.msra.mxu0 0
        %744 = vmatpush.bf16.msra.mxu0 0
        %745 = vmatpush.bf16.msra.mxu0 0
        %746 = vmatpush.bf16.msra.mxu0 %v734
        %747 = vmatpush.bf16.msra.mxu0 %v733
        %748 = vmatmul.bf16.gmra.mxu0 %v738
        %v749 = vpop.f32.mrf.mxu0
        %v750 = vadd.f32 %v723, %v749
        %v751 = vpop.f32.mrf.mxu0
        %752 = vdwg.mxu0
        %v753 = vld [vmem:[%s5] sm:$0xf]
        %v754 = vld [vmem:[%s5 + $0x4] sm:$0xf]
        %v755 = vld [vmem:[%s5 + $0x8] sm:$0xf]
        %v756 = vld [vmem:[%s5 + $0xc] sm:$0xf]
        %v757 = vld [vmem:[%s8] sm:$0x1]
        %v759 = vperm.slane %v757, 0
        %v765 = vunpack.c.l.b16 %v753
        %v766 = vunpack.c.l.b16 %v754
        %v767 = vunpack.c.l.b16 %v755
        %v768 = vunpack.c.l.b16 %v756
        %v769 = vpack.c.b16 %v766, %v765
        %v770 = vpack.c.b16 %v768, %v767
        %v774 = vsel %vm653, %v716, 0
        %776 = vmatpush.bf16.msra.mxu0 0
        %777 = vmatpush.bf16.msra.mxu0 0
        %778 = vmatpush.bf16.msra.mxu0 0
        %779 = vmatpush.bf16.msra.mxu0 0
        %780 = vmatpush.bf16.msra.mxu0 0
        %781 = vmatpush.bf16.msra.mxu0 0
        %782 = vmatpush.bf16.msra.mxu0 %v770
        %783 = vmatpush.bf16.msra.mxu0 %v769
        %784 = vmatmul.bf16.gmra.mxu0 %v774
        %v785 = vpop.f32.mrf.mxu0
        %v786 = vadd.f32 %v759, %v785
        %v787 = vpop.f32.mrf.mxu0
        %788 = vdwg.mxu0
        %v789 = vld [vmem:[%s6] sm:$0xf]
        %v790 = vld [vmem:[%s6 + $0x4] sm:$0xf]
        %v791 = vld [vmem:[%s6 + $0x8] sm:$0xf]
        %v792 = vld [vmem:[%s6 + $0xc] sm:$0xf]
        %v793 = vld [vmem:[%s9] sm:$0x1]
        %v795 = vperm.slane %v793, 0
        %v801 = vunpack.c.l.b16 %v789
        %v802 = vunpack.c.l.b16 %v790
        %v803 = vunpack.c.l.b16 %v791
        %v804 = vunpack.c.l.b16 %v792
        %v805 = vpack.c.b16 %v802, %v801
        %v806 = vpack.c.b16 %v804, %v803
        %809 = vmatpush.bf16.msra.mxu0 0
        %810 = vmatpush.bf16.msra.mxu0 0
        %811 = vmatpush.bf16.msra.mxu0 0
        %812 = vmatpush.bf16.msra.mxu0 0
        %813 = vmatpush.bf16.msra.mxu0 0
        %814 = vmatpush.bf16.msra.mxu0 0
        %815 = vmatpush.bf16.msra.mxu0 %v806
        %816 = vmatpush.bf16.msra.mxu0 %v805
        %817 = vmatmul.bf16.gmra.mxu0 %v774
        %v818 = vpop.f32.mrf.mxu0
        %v819 = vadd.f32 %v795, %v818
        %v820 = vpop.f32.mrf.mxu0
        %821 = vdwg.mxu0
        %v822 = vmul.f32 %v750, 0.35355338
        %824 = vrot.lane.b32.xlu0 %v822, 120
        %v825 = vpop.permute.xlu0 %824
        %827 = vrot.lane.b32.xlu0 %v822, 112
        %v828 = vpop.permute.xlu0 %827
        %830 = vrot.lane.b32.xlu0 %v822, 104
        %v831 = vpop.permute.xlu0 %830
        %v833 = vrot.slane %v828, 4
        %vm834 = vcmask 1047556
        %v835 = vsel %vm834, %v833, %v822
        %v836 = vrot.slane %v822, 4
        %v837 = vsel %vm834, %v828, %v836
        %v839 = vunpack.c.l.s4 1983009808
        %v840 = vunpack.c.0.s8 %v839
        %v841 = vperm.slane %v835, %v840
        %v843 = vunpack.c.l.s4 1983009808
        %v844 = vunpack.c.0.s8 %v843
        %v845 = vperm.slane %v837, %v844
        %v846 = vrot.slane %v831, 4
        %v847 = vsel %vm834, %v846, %v825
        %v848 = vrot.slane %v825, 4
        %v849 = vsel %vm834, %v831, %v848
        %v851 = vunpack.c.l.s4 1983009808
        %v852 = vunpack.c.0.s8 %v851
        %v853 = vperm.slane %v847, %v852
        %v855 = vunpack.c.l.s4 1983009808
        %v856 = vunpack.c.0.s8 %v855
        %v857 = vperm.slane %v849, %v856
        %v858 = vrot.slane %v853, 4
        %v859 = vsel %vm834, %v858, %v841
        %v860 = vrot.slane %v841, 4
        %v861 = vsel %vm834, %v853, %v860
        %v863 = vunpack.c.l.s4 1934713408
        %v864 = vunpack.c.0.s8 %v863
        %v865 = vperm.slane %v859, %v864
        %v867 = vunpack.c.l.s4 1934713408
        %v868 = vunpack.c.0.s8 %v867
        %v869 = vperm.slane %v861, %v868
        %v870 = vrot.slane %v857, 4
        %v871 = vsel %vm834, %v870, %v845
        %v872 = vrot.slane %v845, 4
        %v873 = vsel %vm834, %v857, %v872
        %v875 = vunpack.c.l.s4 1934713408
        %v876 = vunpack.c.0.s8 %v875
        %v877 = vperm.slane %v871, %v876
        %v879 = vunpack.c.l.s4 1934713408
        %v880 = vunpack.c.0.s8 %v879
        %v881 = vperm.slane %v873, %v880
        %v882 = vrot.slane %v865, 4
        %v883 = vsel %vm834, 0.0, %v882
        %v884 = vrot.slane %v869, 4
        %v885 = vsel %vm834, 0.0, %v884
        %v886 = vrot.slane %v877, 4
        %v887 = vsel %vm834, 0.0, %v886
        %v888 = vrot.slane %v881, 4
        %v889 = vsel %vm834, 0.0, %v888
        %v890 = vpack.c.bf16 %v865, %v865
        %v891 = vpack.c.bf16 %v883, %v883
        %v892 = vpack.c.bf16 %v869, %v869
        %v893 = vpack.c.bf16 %v885, %v885
        %v894 = vpack.c.bf16 %v877, %v877
        %v895 = vpack.c.bf16 %v887, %v887
        %v896 = vpack.c.bf16 %v881, %v881
        %v897 = vpack.c.bf16 %v889, %v889
        %899 = vrot.lane.b32.xlu0 %v786, 120
        %v900 = vpop.permute.xlu0 %899
        %902 = vrot.lane.b32.xlu0 %v786, 112
        %v903 = vpop.permute.xlu0 %902
        %905 = vrot.lane.b32.xlu0 %v786, 104
        %v906 = vpop.permute.xlu0 %905
        %v908 = vrot.slane %v903, 4
        %v909 = vsel %vm834, %v908, %v786
        %v910 = vrot.slane %v786, 4
        %v911 = vsel %vm834, %v903, %v910
        %v913 = vunpack.c.l.s4 1983009808
        %v914 = vunpack.c.0.s8 %v913
        %v915 = vperm.slane %v909, %v914
        %v917 = vunpack.c.l.s4 1983009808
        %v918 = vunpack.c.0.s8 %v917
        %v919 = vperm.slane %v911, %v918
        %v920 = vrot.slane %v906, 4
        %v921 = vsel %vm834, %v920, %v900
        %v922 = vrot.slane %v900, 4
        %v923 = vsel %vm834, %v906, %v922
        %v925 = vunpack.c.l.s4 1983009808
        %v926 = vunpack.c.0.s8 %v925
        %v927 = vperm.slane %v921, %v926
        %v929 = vunpack.c.l.s4 1983009808
        %v930 = vunpack.c.0.s8 %v929
        %v931 = vperm.slane %v923, %v930
        %v932 = vrot.slane %v927, 4
        %v933 = vsel %vm834, %v932, %v915
        %v934 = vrot.slane %v915, 4
        %v935 = vsel %vm834, %v927, %v934
        %v937 = vunpack.c.l.s4 1934713408
        %v938 = vunpack.c.0.s8 %v937
        %v939 = vperm.slane %v933, %v938
        %v941 = vunpack.c.l.s4 1934713408
        %v942 = vunpack.c.0.s8 %v941
        %v943 = vperm.slane %v935, %v942
        %v944 = vrot.slane %v931, 4
        %v945 = vsel %vm834, %v944, %v919
        %v946 = vrot.slane %v919, 4
        %v947 = vsel %vm834, %v931, %v946
        %v949 = vunpack.c.l.s4 1934713408
        %v950 = vunpack.c.0.s8 %v949
        %v951 = vperm.slane %v945, %v950
        %v953 = vunpack.c.l.s4 1934713408
        %v954 = vunpack.c.0.s8 %v953
        %v955 = vperm.slane %v947, %v954
        %v956 = vrot.slane %v939, 4
        %v957 = vsel %vm834, 0.0, %v956
        %v958 = vrot.slane %v943, 4
        %v959 = vsel %vm834, 0.0, %v958
        %v960 = vrot.slane %v951, 4
        %v961 = vsel %vm834, 0.0, %v960
        %v962 = vrot.slane %v955, 4
        %v963 = vsel %vm834, 0.0, %v962
        %v964 = vpack.c.bf16 %v939, %v939
        %v965 = vpack.c.bf16 %v957, %v957
        %v966 = vpack.c.bf16 %v943, %v943
        %v967 = vpack.c.bf16 %v959, %v959
        %v968 = vpack.c.bf16 %v951, %v951
        %v969 = vpack.c.bf16 %v961, %v961
        %v970 = vpack.c.bf16 %v955, %v955
        %v971 = vpack.c.bf16 %v963, %v963
        %973 = vrot.lane.b32.xlu0 %v819, 120
        %v974 = vpop.permute.xlu0 %973
        %976 = vrot.lane.b32.xlu0 %v819, 112
        %v977 = vpop.permute.xlu0 %976
        %979 = vrot.lane.b32.xlu0 %v819, 104
        %v980 = vpop.permute.xlu0 %979
        %v982 = vrot.slane %v977, 4
        %v983 = vsel %vm834, %v982, %v819
        %v984 = vrot.slane %v819, 4
        %v985 = vsel %vm834, %v977, %v984
        %v987 = vunpack.c.l.s4 1983009808
        %v988 = vunpack.c.0.s8 %v987
        %v989 = vperm.slane %v983, %v988
        %v991 = vunpack.c.l.s4 1983009808
        %v992 = vunpack.c.0.s8 %v991
        %v993 = vperm.slane %v985, %v992
        %v994 = vrot.slane %v980, 4
        %v995 = vsel %vm834, %v994, %v974
        %v996 = vrot.slane %v974, 4
        %v997 = vsel %vm834, %v980, %v996
        %v999 = vunpack.c.l.s4 1983009808
        %v1000 = vunpack.c.0.s8 %v999
        %v1001 = vperm.slane %v995, %v1000
        %v1003 = vunpack.c.l.s4 1983009808
        %v1004 = vunpack.c.0.s8 %v1003
        %v1005 = vperm.slane %v997, %v1004
        %v1006 = vrot.slane %v1001, 4
        %v1007 = vsel %vm834, %v1006, %v989
        %v1008 = vrot.slane %v989, 4
        %v1009 = vsel %vm834, %v1001, %v1008
        %v1011 = vunpack.c.l.s4 1934713408
        %v1012 = vunpack.c.0.s8 %v1011
        %v1013 = vperm.slane %v1007, %v1012
        %v1015 = vunpack.c.l.s4 1934713408
        %v1016 = vunpack.c.0.s8 %v1015
        %v1017 = vperm.slane %v1009, %v1016
        %v1018 = vrot.slane %v1005, 4
        %v1019 = vsel %vm834, %v1018, %v993
        %v1020 = vrot.slane %v993, 4
        %v1021 = vsel %vm834, %v1005, %v1020
        %v1023 = vunpack.c.l.s4 1934713408
        %v1024 = vunpack.c.0.s8 %v1023
        %v1025 = vperm.slane %v1019, %v1024
        %v1027 = vunpack.c.l.s4 1934713408
        %v1028 = vunpack.c.0.s8 %v1027
        %v1029 = vperm.slane %v1021, %v1028
        %v1030 = vrot.slane %v1013, 4
        %v1031 = vsel %vm834, 0.0, %v1030
        %v1032 = vrot.slane %v1017, 4
        %v1033 = vsel %vm834, 0.0, %v1032
        %v1034 = vrot.slane %v1025, 4
        %v1035 = vsel %vm834, 0.0, %v1034
        %v1036 = vrot.slane %v1029, 4
        %v1037 = vsel %vm834, 0.0, %v1036
        %v1038 = vpack.c.bf16 %v1013, %v1013
        %v1039 = vpack.c.bf16 %v1031, %v1031
        %v1040 = vpack.c.bf16 %v1017, %v1017
        %v1041 = vpack.c.bf16 %v1033, %v1033
        %v1042 = vpack.c.bf16 %v1025, %v1025
        %v1043 = vpack.c.bf16 %v1035, %v1035
        %v1044 = vpack.c.bf16 %v1029, %v1029
        %v1045 = vpack.c.bf16 %v1037, %v1037
        %v1046 = vrot.slane %v894, 4
        %vm1047 = vcmask 1047556
        %v1048 = vsel %vm1047, %v1046, %v890
        %v1050 = vunpack.c.l.s4 1983009808
        %v1051 = vunpack.c.0.s8 %v1050
        %v1052 = vperm.slane %v1048, %v1051
        %v1053 = vrot.slane %v896, 4
        %v1054 = vsel %vm1047, %v1053, %v892
        %v1056 = vunpack.c.l.s4 1983009808
        %v1057 = vunpack.c.0.s8 %v1056
        %v1058 = vperm.slane %v1054, %v1057
        %v1059 = vrot.slane %v1058, 4
        %v1060 = vsel %vm1047, %v1059, %v1052
        %v1062 = vunpack.c.l.s4 1934713408
        %v1063 = vunpack.c.0.s8 %v1062
        %v1064 = vperm.slane %v1060, %v1063
        %v1065 = vrot.slane %v1064, 4
        %v1066 = vsel %vm1047, 0, %v1065
        %v1067 = vrot.slane %v895, 4
        %v1068 = vsel %vm1047, %v1067, %v891
        %v1070 = vunpack.c.l.s4 1983009808
        %v1071 = vunpack.c.0.s8 %v1070
        %v1072 = vperm.slane %v1068, %v1071
        %v1073 = vrot.slane %v897, 4
        %v1074 = vsel %vm1047, %v1073, %v893
        %v1076 = vunpack.c.l.s4 1983009808
        %v1077 = vunpack.c.0.s8 %v1076
        %v1078 = vperm.slane %v1074, %v1077
        %v1079 = vrot.slane %v1078, 4
        %v1080 = vsel %vm1047, %v1079, %v1072
        %v1082 = vunpack.c.l.s4 1934713408
        %v1083 = vunpack.c.0.s8 %v1082
        %v1084 = vperm.slane %v1080, %v1083
        %v1085 = vrot.slane %v1084, 4
        %v1086 = vsel %vm1047, 0, %v1085
        %v1089 = vpack.i.b16 %v1084, %v1064
        %v1090 = vshrl.u32 %v1064, 16
        %v1091 = vshrl.u32 %v1084, 16
        %v1092 = vpack.i.b16 %v1091, %v1090
        %v1095 = vpack.i.b16 %v1086, %v1066
        %v1096 = vshrl.u32 %v1066, 16
        %v1097 = vshrl.u32 %v1086, 16
        %v1098 = vpack.i.b16 %v1097, %v1096
        %1099 = vxpose.xlu0.c.b16.start [1/8] %v964, 128
        %1100 = vxpose.xlu0.c.b16.cont [2/8] 0, 128
        %1101 = vxpose.xlu0.c.b16.cont [3/8] 0, 128
        %1102 = vxpose.xlu0.c.b16.cont [4/8] 0, 128
        %1103 = vxpose.xlu0.c.b16.cont [5/8] 0, 128
        %1104 = vxpose.xlu0.c.b16.cont [6/8] 0, 128
        %1105 = vxpose.xlu0.c.b16.cont [7/8] 0, 128
        %1106 = vxpose.xlu0.c.b16.end [8/8] 0, 128
        %v1107 = vpop.trf.xlu0
        %v1108 = vpop.trf.xlu0
        %v1109 = vpop.trf.xlu0
        %v1110 = vpop.trf.xlu0
        %v1111 = vpop.trf.xlu0
        %v1112 = vpop.trf.xlu0
        %v1113 = vpop.trf.xlu0
        %v1114 = vpop.trf.xlu0
        %1115 = vxpose.xlu0.c.b16.start [1/8] %v965, 128
        %1116 = vxpose.xlu0.c.b16.cont [2/8] 0, 128
        %1117 = vxpose.xlu0.c.b16.cont [3/8] 0, 128
        %1118 = vxpose.xlu0.c.b16.cont [4/8] 0, 128
        %1119 = vxpose.xlu0.c.b16.cont [5/8] 0, 128
        %1120 = vxpose.xlu0.c.b16.cont [6/8] 0, 128
        %1121 = vxpose.xlu0.c.b16.cont [7/8] 0, 128
        %1122 = vxpose.xlu0.c.b16.end [8/8] 0, 128
        %v1123 = vpop.trf.xlu0
        %v1124 = vpop.trf.xlu0
        %v1125 = vpop.trf.xlu0
        %v1126 = vpop.trf.xlu0
        %v1127 = vpop.trf.xlu0
        %v1128 = vpop.trf.xlu0
        %v1129 = vpop.trf.xlu0
        %v1130 = vpop.trf.xlu0
        %1131 = vxpose.xlu0.c.b16.start [1/8] %v966, 128
        %1132 = vxpose.xlu0.c.b16.cont [2/8] 0, 128
        %1133 = vxpose.xlu0.c.b16.cont [3/8] 0, 128
        %1134 = vxpose.xlu0.c.b16.cont [4/8] 0, 128
        %1135 = vxpose.xlu0.c.b16.cont [5/8] 0, 128
        %1136 = vxpose.xlu0.c.b16.cont [6/8] 0, 128
        %1137 = vxpose.xlu0.c.b16.cont [7/8] 0, 128
        %1138 = vxpose.xlu0.c.b16.end [8/8] 0, 128
        %v1139 = vpop.trf.xlu0
        %v1140 = vpop.trf.xlu0
        %v1141 = vpop.trf.xlu0
        %v1142 = vpop.trf.xlu0
        %v1143 = vpop.trf.xlu0
        %v1144 = vpop.trf.xlu0
        %v1145 = vpop.trf.xlu0
        %v1146 = vpop.trf.xlu0
        %1147 = vxpose.xlu0.c.b16.start [1/8] %v967, 128
        %1148 = vxpose.xlu0.c.b16.cont [2/8] 0, 128
        %1149 = vxpose.xlu0.c.b16.cont [3/8] 0, 128
        %1150 = vxpose.xlu0.c.b16.cont [4/8] 0, 128
        %1151 = vxpose.xlu0.c.b16.cont [5/8] 0, 128
        %1152 = vxpose.xlu0.c.b16.cont [6/8] 0, 128
        %1153 = vxpose.xlu0.c.b16.cont [7/8] 0, 128
        %1154 = vxpose.xlu0.c.b16.end [8/8] 0, 128
        %v1155 = vpop.trf.xlu0
        %v1156 = vpop.trf.xlu0
        %v1157 = vpop.trf.xlu0
        %v1158 = vpop.trf.xlu0
        %v1159 = vpop.trf.xlu0
        %v1160 = vpop.trf.xlu0
        %v1161 = vpop.trf.xlu0
        %v1162 = vpop.trf.xlu0
        %1163 = vxpose.xlu0.c.b16.start [1/8] %v968, 128
        %1164 = vxpose.xlu0.c.b16.cont [2/8] 0, 128
        %1165 = vxpose.xlu0.c.b16.cont [3/8] 0, 128
        %1166 = vxpose.xlu0.c.b16.cont [4/8] 0, 128
        %1167 = vxpose.xlu0.c.b16.cont [5/8] 0, 128
        %1168 = vxpose.xlu0.c.b16.cont [6/8] 0, 128
        %1169 = vxpose.xlu0.c.b16.cont [7/8] 0, 128
        %1170 = vxpose.xlu0.c.b16.end [8/8] 0, 128
        %v1171 = vpop.trf.xlu0
        %v1172 = vpop.trf.xlu0
        %v1173 = vpop.trf.xlu0
        %v1174 = vpop.trf.xlu0
        %v1175 = vpop.trf.xlu0
        %v1176 = vpop.trf.xlu0
        %v1177 = vpop.trf.xlu0
        %v1178 = vpop.trf.xlu0
        %1179 = vxpose.xlu0.c.b16.start [1/8] %v969, 128
        %1180 = vxpose.xlu0.c.b16.cont [2/8] 0, 128
        %1181 = vxpose.xlu0.c.b16.cont [3/8] 0, 128
        %1182 = vxpose.xlu0.c.b16.cont [4/8] 0, 128
        %1183 = vxpose.xlu0.c.b16.cont [5/8] 0, 128
        %1184 = vxpose.xlu0.c.b16.cont [6/8] 0, 128
        %1185 = vxpose.xlu0.c.b16.cont [7/8] 0, 128
        %1186 = vxpose.xlu0.c.b16.end [8/8] 0, 128
        %v1187 = vpop.trf.xlu0
        %v1188 = vpop.trf.xlu0
        %v1189 = vpop.trf.xlu0
        %v1190 = vpop.trf.xlu0
        %v1191 = vpop.trf.xlu0
        %v1192 = vpop.trf.xlu0
        %v1193 = vpop.trf.xlu0
        %v1194 = vpop.trf.xlu0
        %1195 = vxpose.xlu0.c.b16.start [1/8] %v970, 128
        %1196 = vxpose.xlu0.c.b16.cont [2/8] 0, 128
        %1197 = vxpose.xlu0.c.b16.cont [3/8] 0, 128
        %1198 = vxpose.xlu0.c.b16.cont [4/8] 0, 128
        %1199 = vxpose.xlu0.c.b16.cont [5/8] 0, 128
        %1200 = vxpose.xlu0.c.b16.cont [6/8] 0, 128
        %1201 = vxpose.xlu0.c.b16.cont [7/8] 0, 128
        %1202 = vxpose.xlu0.c.b16.end [8/8] 0, 128
        %v1203 = vpop.trf.xlu0
        %v1204 = vpop.trf.xlu0
        %v1205 = vpop.trf.xlu0
        %v1206 = vpop.trf.xlu0
        %v1207 = vpop.trf.xlu0
        %v1208 = vpop.trf.xlu0
        %v1209 = vpop.trf.xlu0
        %v1210 = vpop.trf.xlu0
        %1211 = vxpose.xlu0.c.b16.start [1/8] %v971, 128
        %1212 = vxpose.xlu0.c.b16.cont [2/8] 0, 128
        %1213 = vxpose.xlu0.c.b16.cont [3/8] 0, 128
        %1214 = vxpose.xlu0.c.b16.cont [4/8] 0, 128
        %1215 = vxpose.xlu0.c.b16.cont [5/8] 0, 128
        %1216 = vxpose.xlu0.c.b16.cont [6/8] 0, 128
        %1217 = vxpose.xlu0.c.b16.cont [7/8] 0, 128
        %1218 = vxpose.xlu0.c.b16.end [8/8] 0, 128
        %v1219 = vpop.trf.xlu0
        %v1220 = vpop.trf.xlu0
        %v1221 = vpop.trf.xlu0
        %v1222 = vpop.trf.xlu0
        %v1223 = vpop.trf.xlu0
        %v1224 = vpop.trf.xlu0
        %v1225 = vpop.trf.xlu0
        %v1226 = vpop.trf.xlu0
        %v1227 = vrot.slane %v1171, 4
        %v1228 = vsel %vm1047, %v1227, %v1107
        %v1230 = vunpack.c.l.s4 1983009808
        %v1231 = vunpack.c.0.s8 %v1230
        %v1232 = vperm.slane %v1228, %v1231
        %v1233 = vrot.slane %v1203, 4
        %v1234 = vsel %vm1047, %v1233, %v1139
        %v1236 = vunpack.c.l.s4 1983009808
        %v1237 = vunpack.c.0.s8 %v1236
        %v1238 = vperm.slane %v1234, %v1237
        %v1239 = vrot.slane %v1238, 4
        %v1240 = vsel %vm1047, %v1239, %v1232
        %v1241 = vrot.slane %v1232, 4
        %v1242 = vsel %vm1047, %v1238, %v1241
        %v1244 = vunpack.c.l.s4 1934713408
        %v1245 = vunpack.c.0.s8 %v1244
        %v1246 = vperm.slane %v1240, %v1245
        %v1248 = vunpack.c.l.s4 1934713408
        %v1249 = vunpack.c.0.s8 %v1248
        %v1250 = vperm.slane %v1242, %v1249
        %v1251 = vrot.slane %v1246, 4
        %v1252 = vsel %vm1047, 0, %v1251
        %v1253 = vrot.slane %v1250, 4
        %v1254 = vsel %vm1047, 0, %v1253
        %v1255 = vrot.slane %v1187, 4
        %v1256 = vsel %vm1047, %v1255, %v1123
        %v1258 = vunpack.c.l.s4 1983009808
        %v1259 = vunpack.c.0.s8 %v1258
        %v1260 = vperm.slane %v1256, %v1259
        %v1261 = vrot.slane %v1219, 4
        %v1262 = vsel %vm1047, %v1261, %v1155
        %v1264 = vunpack.c.l.s4 1983009808
        %v1265 = vunpack.c.0.s8 %v1264
        %v1266 = vperm.slane %v1262, %v1265
        %v1267 = vrot.slane %v1266, 4
        %v1268 = vsel %vm1047, %v1267, %v1260
        %v1269 = vrot.slane %v1260, 4
        %v1270 = vsel %vm1047, %v1266, %v1269
        %v1272 = vunpack.c.l.s4 1934713408
        %v1273 = vunpack.c.0.s8 %v1272
        %v1274 = vperm.slane %v1268, %v1273
        %v1276 = vunpack.c.l.s4 1934713408
        %v1277 = vunpack.c.0.s8 %v1276
        %v1278 = vperm.slane %v1270, %v1277
        %v1279 = vrot.slane %v1274, 4
        %v1280 = vsel %vm1047, 0, %v1279
        %v1281 = vrot.slane %v1278, 4
        %v1282 = vsel %vm1047, 0, %v1281
        %v1285 = vpack.i.b16 %v1274, %v1246
        %v1287 = vshrl.u32 %v1246, 16
        %v1288 = vshrl.u32 %v1274, 16
        %v1289 = vpack.i.b16 %v1288, %v1287
        %v1293 = vpack.i.b16 %v1280, %v1252
        %v1295 = vshrl.u32 %v1252, 16
        %v1296 = vshrl.u32 %v1280, 16
        %v1297 = vpack.i.b16 %v1296, %v1295
        %v1301 = vpack.i.b16 %v1278, %v1250
        %v1303 = vshrl.u32 %v1250, 16
        %v1304 = vshrl.u32 %v1278, 16
        %v1305 = vpack.i.b16 %v1304, %v1303
        %v1309 = vpack.i.b16 %v1282, %v1254
        %v1311 = vshrl.u32 %v1254, 16
        %v1312 = vshrl.u32 %v1282, 16
        %v1313 = vpack.i.b16 %v1312, %v1311
        %1315 = vxpose.xlu0.c.b16.start [1/8] %v1285, 128
        %1316 = vxpose.xlu0.c.b16.cont [2/8] 0, 128
        %1317 = vxpose.xlu0.c.b16.cont [3/8] 0, 128
        %1318 = vxpose.xlu0.c.b16.cont [4/8] 0, 128
        %1319 = vxpose.xlu0.c.b16.cont [5/8] 0, 128
        %1320 = vxpose.xlu0.c.b16.cont [6/8] 0, 128
        %1321 = vxpose.xlu0.c.b16.cont [7/8] 0, 128
        %1322 = vxpose.xlu0.c.b16.end [8/8] 0, 128
        %v1323 = vpop.trf.xlu0
        %v1324 = vpop.trf.xlu0
        %v1325 = vpop.trf.xlu0
        %v1326 = vpop.trf.xlu0
        %v1327 = vpop.trf.xlu0
        %v1328 = vpop.trf.xlu0
        %v1329 = vpop.trf.xlu0
        %v1330 = vpop.trf.xlu0
        %1331 = vxpose.xlu0.c.b16.start [1/8] %v1289, 128
        %1332 = vxpose.xlu0.c.b16.cont [2/8] 0, 128
        %1333 = vxpose.xlu0.c.b16.cont [3/8] 0, 128
        %1334 = vxpose.xlu0.c.b16.cont [4/8] 0, 128
        %1335 = vxpose.xlu0.c.b16.cont [5/8] 0, 128
        %1336 = vxpose.xlu0.c.b16.cont [6/8] 0, 128
        %1337 = vxpose.xlu0.c.b16.cont [7/8] 0, 128
        %1338 = vxpose.xlu0.c.b16.end [8/8] 0, 128
        %v1339 = vpop.trf.xlu0
        %v1340 = vpop.trf.xlu0
        %v1341 = vpop.trf.xlu0
        %v1342 = vpop.trf.xlu0
        %v1343 = vpop.trf.xlu0
        %v1344 = vpop.trf.xlu0
        %v1345 = vpop.trf.xlu0
        %v1346 = vpop.trf.xlu0
        %1347 = vxpose.xlu0.c.b16.start [1/8] %v1293, 128
        %1348 = vxpose.xlu0.c.b16.cont [2/8] 0, 128
        %1349 = vxpose.xlu0.c.b16.cont [3/8] 0, 128
        %1350 = vxpose.xlu0.c.b16.cont [4/8] 0, 128
        %1351 = vxpose.xlu0.c.b16.cont [5/8] 0, 128
        %1352 = vxpose.xlu0.c.b16.cont [6/8] 0, 128
        %1353 = vxpose.xlu0.c.b16.cont [7/8] 0, 128
        %1354 = vxpose.xlu0.c.b16.end [8/8] 0, 128
        %v1355 = vpop.trf.xlu0
        %v1356 = vpop.trf.xlu0
        %v1357 = vpop.trf.xlu0
        %v1358 = vpop.trf.xlu0
        %v1359 = vpop.trf.xlu0
        %v1360 = vpop.trf.xlu0
        %v1361 = vpop.trf.xlu0
        %v1362 = vpop.trf.xlu0
        %1363 = vxpose.xlu0.c.b16.start [1/8] %v1297, 128
        %1364 = vxpose.xlu0.c.b16.cont [2/8] 0, 128
        %1365 = vxpose.xlu0.c.b16.cont [3/8] 0, 128
        %1366 = vxpose.xlu0.c.b16.cont [4/8] 0, 128
        %1367 = vxpose.xlu0.c.b16.cont [5/8] 0, 128
        %1368 = vxpose.xlu0.c.b16.cont [6/8] 0, 128
        %1369 = vxpose.xlu0.c.b16.cont [7/8] 0, 128
        %1370 = vxpose.xlu0.c.b16.end [8/8] 0, 128
        %v1371 = vpop.trf.xlu0
        %v1372 = vpop.trf.xlu0
        %v1373 = vpop.trf.xlu0
        %v1374 = vpop.trf.xlu0
        %v1375 = vpop.trf.xlu0
        %v1376 = vpop.trf.xlu0
        %v1377 = vpop.trf.xlu0
        %v1378 = vpop.trf.xlu0
        %1379 = vxpose.xlu0.c.b16.start [1/8] %v1301, 128
        %1380 = vxpose.xlu0.c.b16.cont [2/8] 0, 128
        %1381 = vxpose.xlu0.c.b16.cont [3/8] 0, 128
        %1382 = vxpose.xlu0.c.b16.cont [4/8] 0, 128
        %1383 = vxpose.xlu0.c.b16.cont [5/8] 0, 128
        %1384 = vxpose.xlu0.c.b16.cont [6/8] 0, 128
        %1385 = vxpose.xlu0.c.b16.cont [7/8] 0, 128
        %1386 = vxpose.xlu0.c.b16.end [8/8] 0, 128
        %v1387 = vpop.trf.xlu0
        %v1388 = vpop.trf.xlu0
        %v1389 = vpop.trf.xlu0
        %v1390 = vpop.trf.xlu0
        %v1391 = vpop.trf.xlu0
        %v1392 = vpop.trf.xlu0
        %v1393 = vpop.trf.xlu0
        %v1394 = vpop.trf.xlu0
        %1395 = vxpose.xlu0.c.b16.start [1/8] %v1305, 128
        %1396 = vxpose.xlu0.c.b16.cont [2/8] 0, 128
        %1397 = vxpose.xlu0.c.b16.cont [3/8] 0, 128
        %1398 = vxpose.xlu0.c.b16.cont [4/8] 0, 128
        %1399 = vxpose.xlu0.c.b16.cont [5/8] 0, 128
        %1400 = vxpose.xlu0.c.b16.cont [6/8] 0, 128
        %1401 = vxpose.xlu0.c.b16.cont [7/8] 0, 128
        %1402 = vxpose.xlu0.c.b16.end [8/8] 0, 128
        %v1403 = vpop.trf.xlu0
        %v1404 = vpop.trf.xlu0
        %v1405 = vpop.trf.xlu0
        %v1406 = vpop.trf.xlu0
        %v1407 = vpop.trf.xlu0
        %v1408 = vpop.trf.xlu0
        %v1409 = vpop.trf.xlu0
        %v1410 = vpop.trf.xlu0
        %1411 = vxpose.xlu0.c.b16.start [1/8] %v1309, 128
        %1412 = vxpose.xlu0.c.b16.cont [2/8] 0, 128
        %1413 = vxpose.xlu0.c.b16.cont [3/8] 0, 128
        %1414 = vxpose.xlu0.c.b16.cont [4/8] 0, 128
        %1415 = vxpose.xlu0.c.b16.cont [5/8] 0, 128
        %1416 = vxpose.xlu0.c.b16.cont [6/8] 0, 128
        %1417 = vxpose.xlu0.c.b16.cont [7/8] 0, 128
        %1418 = vxpose.xlu0.c.b16.end [8/8] 0, 128
        %v1419 = vpop.trf.xlu0
        %v1420 = vpop.trf.xlu0
        %v1421 = vpop.trf.xlu0
        %v1422 = vpop.trf.xlu0
        %v1423 = vpop.trf.xlu0
        %v1424 = vpop.trf.xlu0
        %v1425 = vpop.trf.xlu0
        %v1426 = vpop.trf.xlu0
        %1427 = vxpose.xlu0.c.b16.start [1/8] %v1313, 128
        %1428 = vxpose.xlu0.c.b16.cont [2/8] 0, 128
        %1429 = vxpose.xlu0.c.b16.cont [3/8] 0, 128
        %1430 = vxpose.xlu0.c.b16.cont [4/8] 0, 128
        %1431 = vxpose.xlu0.c.b16.cont [5/8] 0, 128
        %1432 = vxpose.xlu0.c.b16.cont [6/8] 0, 128
        %1433 = vxpose.xlu0.c.b16.cont [7/8] 0, 128
        %1434 = vxpose.xlu0.c.b16.end [8/8] 0, 128
        %v1435 = vpop.trf.xlu0
        %v1436 = vpop.trf.xlu0
        %v1437 = vpop.trf.xlu0
        %v1438 = vpop.trf.xlu0
        %v1439 = vpop.trf.xlu0
        %v1440 = vpop.trf.xlu0
        %v1441 = vpop.trf.xlu0
        %v1442 = vpop.trf.xlu0
        %v1443 = vrot.slane %v1387, 4
        %v1444 = vsel %vm1047, %v1443, %v1323
        %v1446 = vunpack.c.l.s4 1983009808
        %v1447 = vunpack.c.0.s8 %v1446
        %v1448 = vperm.slane %v1444, %v1447
        %v1449 = vrot.slane %v1419, 4
        %v1450 = vsel %vm1047, %v1449, %v1355
        %v1452 = vunpack.c.l.s4 1983009808
        %v1453 = vunpack.c.0.s8 %v1452
        %v1454 = vperm.slane %v1450, %v1453
        %v1455 = vrot.slane %v1454, 4
        %v1456 = vsel %vm1047, %v1455, %v1448
        %v1458 = vunpack.c.l.s4 1934713408
        %v1459 = vunpack.c.0.s8 %v1458
        %v1460 = vperm.slane %v1456, %v1459
        %v1461 = vrot.slane %v1460, 4
        %v1462 = vsel %vm1047, 0, %v1461
        %v1463 = vrot.slane %v1403, 4
        %v1464 = vsel %vm1047, %v1463, %v1339
        %v1466 = vunpack.c.l.s4 1983009808
        %v1467 = vunpack.c.0.s8 %v1466
        %v1468 = vperm.slane %v1464, %v1467
        %v1469 = vrot.slane %v1435, 4
        %v1470 = vsel %vm1047, %v1469, %v1371
        %v1472 = vunpack.c.l.s4 1983009808
        %v1473 = vunpack.c.0.s8 %v1472
        %v1474 = vperm.slane %v1470, %v1473
        %v1475 = vrot.slane %v1474, 4
        %v1476 = vsel %vm1047, %v1475, %v1468
        %v1478 = vunpack.c.l.s4 1934713408
        %v1479 = vunpack.c.0.s8 %v1478
        %v1480 = vperm.slane %v1476, %v1479
        %v1481 = vrot.slane %v1480, 4
        %v1482 = vsel %vm1047, 0, %v1481
        %v1485 = vpack.i.b16 %v1480, %v1460
        %v1486 = vshrl.u32 %v1460, 16
        %v1487 = vshrl.u32 %v1480, 16
        %v1488 = vpack.i.b16 %v1487, %v1486
        %v1491 = vpack.i.b16 %v1482, %v1462
        %v1492 = vshrl.u32 %v1462, 16
        %v1493 = vshrl.u32 %v1482, 16
        %v1494 = vpack.i.b16 %v1493, %v1492
        %vm1495 = vcmask 64512
        %v1497 = vsel %vm1495, %v1089, 0
        %vm1499 = vcmask 1043456
        %v1501 = vsel %vm1499, %v1485, 0
        %1503 = vmatpush.bf16.msra.mxu0 0
        %1504 = vmatpush.bf16.msra.mxu0 0
        %1505 = vmatpush.bf16.msra.mxu0 0
        %1506 = vmatpush.bf16.msra.mxu0 0
        %1507 = vmatpush.bf16.msra.mxu0 0
        %1508 = vmatpush.bf16.msra.mxu0 0
        %1509 = vmatpush.bf16.msra.mxu0 0
        %1510 = vmatpush.bf16.msra.mxu0 %v1501
        %1511 = vmatmul.bf16.gmra.mxu0 %v1497
        %v1512 = vpop.f32.mrf.mxu0
        %v1513 = vadd.f32 0.0, %v1512
        %v1514 = vpop.f32.mrf.mxu0
        %1515 = vdwg.mxu0
        %v1517 = vsel %vm1495, %v1092, 0
        %v1520 = vsel %vm1499, %v1488, 0
        %1522 = vmatpush.bf16.msra.mxu0 0
        %1523 = vmatpush.bf16.msra.mxu0 0
        %1524 = vmatpush.bf16.msra.mxu0 0
        %1525 = vmatpush.bf16.msra.mxu0 0
        %1526 = vmatpush.bf16.msra.mxu0 0
        %1527 = vmatpush.bf16.msra.mxu0 0
        %1528 = vmatpush.bf16.msra.mxu0 0
        %1529 = vmatpush.bf16.msra.mxu0 %v1520
        %1530 = vmatmul.bf16.gmra.mxu0 %v1517
        %v1531 = vpop.f32.mrf.mxu0
        %v1532 = vadd.f32 0.0, %v1531
        %v1533 = vpop.f32.mrf.mxu0
        %1534 = vdwg.mxu0
        %v1536 = vsel %vm1495, %v1095, 0
        %v1539 = vsel %vm1499, %v1491, 0
        %1541 = vmatpush.bf16.msra.mxu0 0
        %1542 = vmatpush.bf16.msra.mxu0 0
        %1543 = vmatpush.bf16.msra.mxu0 0
        %1544 = vmatpush.bf16.msra.mxu0 0
        %1545 = vmatpush.bf16.msra.mxu0 0
        %1546 = vmatpush.bf16.msra.mxu0 0
        %1547 = vmatpush.bf16.msra.mxu0 0
        %1548 = vmatpush.bf16.msra.mxu0 %v1539
        %1549 = vmatmul.bf16.gmra.mxu0 %v1536
        %v1550 = vpop.f32.mrf.mxu0
        %v1551 = vadd.f32 0.0, %v1550
        %v1552 = vpop.f32.mrf.mxu0
        %1553 = vdwg.mxu0
        %v1555 = vsel %vm1495, %v1098, 0
        %v1558 = vsel %vm1499, %v1494, 0
        %1560 = vmatpush.bf16.msra.mxu0 0
        %1561 = vmatpush.bf16.msra.mxu0 0
        %1562 = vmatpush.bf16.msra.mxu0 0
        %1563 = vmatpush.bf16.msra.mxu0 0
        %1564 = vmatpush.bf16.msra.mxu0 0
        %1565 = vmatpush.bf16.msra.mxu0 0
        %1566 = vmatpush.bf16.msra.mxu0 0
        %1567 = vmatpush.bf16.msra.mxu0 %v1558
        %1568 = vmatmul.bf16.gmra.mxu0 %v1555
        %v1569 = vpop.f32.mrf.mxu0
        %v1570 = vadd.f32 0.0, %v1569
        %v1571 = vpop.f32.mrf.mxu0
        %1572 = vdwg.mxu0
        %v1573 = vlaneseq
        %v1574 = vshrl.u32 %v1573, 7
        %v1575 = vstv %s648
        %v1576 = vadd.s32 %v1575, %v1574
        %v1577 = vlaneseq
        %v1578 = vand.u32 %v1577, 127
        %vm1579 = vcmp.gt.s32.totalorder %v1578, %v1576
        %v1580 = vsel %vm1579, 1, 0
        %vm1581 = vcmp.eq.s32.totalorder %v1580, 1
        %v1582 = vsel %vm1581, -1e+30, %v1513
        %v1583 = vsel %vm1581, -1e+30, %v1532
        %v1584 = vsel %vm1581, -1e+30, %v1551
        %v1585 = vsel %vm1581, -1e+30, %v1570
        %v1586 = vsel %vm1495, %v1582, -inf
        %1587 = vmax.xlane.f32.xlu0 %v1586
        %v1588 = vpop.xlane.xlu0 %1587
        %v1589 = vsel %vm1495, %v1583, -inf
        %1590 = vmax.xlane.f32.xlu0 %v1589
        %v1591 = vpop.xlane.xlu0 %1590
        %v1592 = vsel %vm1495, %v1584, -inf
        %1593 = vmax.xlane.f32.xlu0 %v1592
        %v1594 = vpop.xlane.xlu0 %1593
        %v1595 = vsel %vm1495, %v1585, -inf
        %1596 = vmax.xlane.f32.xlu0 %v1595
        %v1597 = vpop.xlane.xlu0 %1596
        %v1598 = vsub.f32 %v1582, %v1588
        %v1599 = vsub.f32 %v1583, %v1591
        %v1600 = vsub.f32 %v1584, %v1594
        %v1601 = vsub.f32 %v1585, %v1597
        %v1602 = vmul.f32 %v1598, 1.442695
        %v1603 = vpow.pop %v1602
        %v1604 = vmul.f32 %v1599, 1.442695
        %v1605 = vpow.pop %v1604
        %v1606 = vmul.f32 %v1600, 1.442695
        %v1607 = vpow.pop %v1606
        %v1608 = vmul.f32 %v1601, 1.442695
        %v1609 = vpow.pop %v1608
        %v1610 = vsel %vm1495, %v1603, 0.0
        %1611 = vadd.xlane.f32.xlu0 %v1610
        %v1612 = vpop.xlane.xlu0 %1611
        %v1613 = vsel %vm1495, %v1605, 0.0
        %1614 = vadd.xlane.f32.xlu0 %v1613
        %v1615 = vpop.xlane.xlu0 %1614
        %v1616 = vsel %vm1495, %v1607, 0.0
        %1617 = vadd.xlane.f32.xlu0 %v1616
        %v1618 = vpop.xlane.xlu0 %1617
        %v1619 = vsel %vm1495, %v1609, 0.0
        %1620 = vadd.xlane.f32.xlu0 %v1619
        %v1621 = vpop.xlane.xlu0 %1620
        %v1622 = vrcp.pop %v1612
        %v1623 = vrcp.pop %v1615
        %v1624 = vrcp.pop %v1618
        %v1625 = vrcp.pop %v1621
        %v1626 = vmul.f32 %v1603, %v1622
        %v1627 = vmul.f32 %v1605, %v1623
        %v1628 = vmul.f32 %v1607, %v1624
        %v1629 = vmul.f32 %v1609, %v1625
        %v1630 = vpack.c.bf16 %v1626, %v1626
        %v1631 = vpack.c.bf16 %v1627, %v1627
        %v1632 = vpack.c.bf16 %v1628, %v1628
        %v1633 = vpack.c.bf16 %v1629, %v1629
        %1634 = vxpose.xlu0.c.b16.start [1/8] %v1038, 128
        %1635 = vxpose.xlu0.c.b16.cont [2/8] 0, 128
        %1636 = vxpose.xlu0.c.b16.cont [3/8] 0, 128
        %1637 = vxpose.xlu0.c.b16.cont [4/8] 0, 128
        %1638 = vxpose.xlu0.c.b16.cont [5/8] 0, 128
        %1639 = vxpose.xlu0.c.b16.cont [6/8] 0, 128
        %1640 = vxpose.xlu0.c.b16.cont [7/8] 0, 128
        %1641 = vxpose.xlu0.c.b16.end [8/8] 0, 128
        %v1642 = vpop.trf.xlu0
        %v1643 = vpop.trf.xlu0
        %v1644 = vpop.trf.xlu0
        %v1645 = vpop.trf.xlu0
        %v1646 = vpop.trf.xlu0
        %v1647 = vpop.trf.xlu0
        %v1648 = vpop.trf.xlu0
        %v1649 = vpop.trf.xlu0
        %1650 = vxpose.xlu0.c.b16.start [1/8] %v1039, 128
        %1651 = vxpose.xlu0.c.b16.cont [2/8] 0, 128
        %1652 = vxpose.xlu0.c.b16.cont [3/8] 0, 128
        %1653 = vxpose.xlu0.c.b16.cont [4/8] 0, 128
        %1654 = vxpose.xlu0.c.b16.cont [5/8] 0, 128
        %1655 = vxpose.xlu0.c.b16.cont [6/8] 0, 128
        %1656 = vxpose.xlu0.c.b16.cont [7/8] 0, 128
        %1657 = vxpose.xlu0.c.b16.end [8/8] 0, 128
        %v1658 = vpop.trf.xlu0
        %v1659 = vpop.trf.xlu0
        %v1660 = vpop.trf.xlu0
        %v1661 = vpop.trf.xlu0
        %v1662 = vpop.trf.xlu0
        %v1663 = vpop.trf.xlu0
        %v1664 = vpop.trf.xlu0
        %v1665 = vpop.trf.xlu0
        %1666 = vxpose.xlu0.c.b16.start [1/8] %v1040, 128
        %1667 = vxpose.xlu0.c.b16.cont [2/8] 0, 128
        %1668 = vxpose.xlu0.c.b16.cont [3/8] 0, 128
        %1669 = vxpose.xlu0.c.b16.cont [4/8] 0, 128
        %1670 = vxpose.xlu0.c.b16.cont [5/8] 0, 128
        %1671 = vxpose.xlu0.c.b16.cont [6/8] 0, 128
        %1672 = vxpose.xlu0.c.b16.cont [7/8] 0, 128
        %1673 = vxpose.xlu0.c.b16.end [8/8] 0, 128
        %v1674 = vpop.trf.xlu0
        %v1675 = vpop.trf.xlu0
        %v1676 = vpop.trf.xlu0
        %v1677 = vpop.trf.xlu0
        %v1678 = vpop.trf.xlu0
        %v1679 = vpop.trf.xlu0
        %v1680 = vpop.trf.xlu0
        %v1681 = vpop.trf.xlu0
        %1682 = vxpose.xlu0.c.b16.start [1/8] %v1041, 128
        %1683 = vxpose.xlu0.c.b16.cont [2/8] 0, 128
        %1684 = vxpose.xlu0.c.b16.cont [3/8] 0, 128
        %1685 = vxpose.xlu0.c.b16.cont [4/8] 0, 128
        %1686 = vxpose.xlu0.c.b16.cont [5/8] 0, 128
        %1687 = vxpose.xlu0.c.b16.cont [6/8] 0, 128
        %1688 = vxpose.xlu0.c.b16.cont [7/8] 0, 128
        %1689 = vxpose.xlu0.c.b16.end [8/8] 0, 128
        %v1690 = vpop.trf.xlu0
        %v1691 = vpop.trf.xlu0
        %v1692 = vpop.trf.xlu0
        %v1693 = vpop.trf.xlu0
        %v1694 = vpop.trf.xlu0
        %v1695 = vpop.trf.xlu0
        %v1696 = vpop.trf.xlu0
        %v1697 = vpop.trf.xlu0
        %1698 = vxpose.xlu0.c.b16.start [1/8] %v1042, 128
        %1699 = vxpose.xlu0.c.b16.cont [2/8] 0, 128
        %1700 = vxpose.xlu0.c.b16.cont [3/8] 0, 128
        %1701 = vxpose.xlu0.c.b16.cont [4/8] 0, 128
        %1702 = vxpose.xlu0.c.b16.cont [5/8] 0, 128
        %1703 = vxpose.xlu0.c.b16.cont [6/8] 0, 128
        %1704 = vxpose.xlu0.c.b16.cont [7/8] 0, 128
        %1705 = vxpose.xlu0.c.b16.end [8/8] 0, 128
        %v1706 = vpop.trf.xlu0
        %v1707 = vpop.trf.xlu0
        %v1708 = vpop.trf.xlu0
        %v1709 = vpop.trf.xlu0
        %v1710 = vpop.trf.xlu0
        %v1711 = vpop.trf.xlu0
        %v1712 = vpop.trf.xlu0
        %v1713 = vpop.trf.xlu0
        %1714 = vxpose.xlu0.c.b16.start [1/8] %v1043, 128
        %1715 = vxpose.xlu0.c.b16.cont [2/8] 0, 128
        %1716 = vxpose.xlu0.c.b16.cont [3/8] 0, 128
        %1717 = vxpose.xlu0.c.b16.cont [4/8] 0, 128
        %1718 = vxpose.xlu0.c.b16.cont [5/8] 0, 128
        %1719 = vxpose.xlu0.c.b16.cont [6/8] 0, 128
        %1720 = vxpose.xlu0.c.b16.cont [7/8] 0, 128
        %1721 = vxpose.xlu0.c.b16.end [8/8] 0, 128
        %v1722 = vpop.trf.xlu0
        %v1723 = vpop.trf.xlu0
        %v1724 = vpop.trf.xlu0
        %v1725 = vpop.trf.xlu0
        %v1726 = vpop.trf.xlu0
        %v1727 = vpop.trf.xlu0
        %v1728 = vpop.trf.xlu0
        %v1729 = vpop.trf.xlu0
        %1730 = vxpose.xlu0.c.b16.start [1/8] %v1044, 128
        %1731 = vxpose.xlu0.c.b16.cont [2/8] 0, 128
        %1732 = vxpose.xlu0.c.b16.cont [3/8] 0, 128
        %1733 = vxpose.xlu0.c.b16.cont [4/8] 0, 128
        %1734 = vxpose.xlu0.c.b16.cont [5/8] 0, 128
        %1735 = vxpose.xlu0.c.b16.cont [6/8] 0, 128
        %1736 = vxpose.xlu0.c.b16.cont [7/8] 0, 128
        %1737 = vxpose.xlu0.c.b16.end [8/8] 0, 128
        %v1738 = vpop.trf.xlu0
        %v1739 = vpop.trf.xlu0
        %v1740 = vpop.trf.xlu0
        %v1741 = vpop.trf.xlu0
        %v1742 = vpop.trf.xlu0
        %v1743 = vpop.trf.xlu0
        %v1744 = vpop.trf.xlu0
        %v1745 = vpop.trf.xlu0
        %1746 = vxpose.xlu0.c.b16.start [1/8] %v1045, 128
        %1747 = vxpose.xlu0.c.b16.cont [2/8] 0, 128
        %1748 = vxpose.xlu0.c.b16.cont [3/8] 0, 128
        %1749 = vxpose.xlu0.c.b16.cont [4/8] 0, 128
        %1750 = vxpose.xlu0.c.b16.cont [5/8] 0, 128
        %1751 = vxpose.xlu0.c.b16.cont [6/8] 0, 128
        %1752 = vxpose.xlu0.c.b16.cont [7/8] 0, 128
        %1753 = vxpose.xlu0.c.b16.end [8/8] 0, 128
        %v1754 = vpop.trf.xlu0
        %v1755 = vpop.trf.xlu0
        %v1756 = vpop.trf.xlu0
        %v1757 = vpop.trf.xlu0
        %v1758 = vpop.trf.xlu0
        %v1759 = vpop.trf.xlu0
        %v1760 = vpop.trf.xlu0
        %v1761 = vpop.trf.xlu0
        %v1762 = vrot.slane %v1706, 4
        %v1763 = vsel %vm1047, %v1762, %v1642
        %v1765 = vunpack.c.l.s4 1983009808
        %v1766 = vunpack.c.0.s8 %v1765
        %v1767 = vperm.slane %v1763, %v1766
        %v1768 = vrot.slane %v1738, 4
        %v1769 = vsel %vm1047, %v1768, %v1674
        %v1771 = vunpack.c.l.s4 1983009808
        %v1772 = vunpack.c.0.s8 %v1771
        %v1773 = vperm.slane %v1769, %v1772
        %v1774 = vrot.slane %v1773, 4
        %v1775 = vsel %vm1047, %v1774, %v1767
        %v1776 = vrot.slane %v1767, 4
        %v1777 = vsel %vm1047, %v1773, %v1776
        %v1779 = vunpack.c.l.s4 1934713408
        %v1780 = vunpack.c.0.s8 %v1779
        %v1781 = vperm.slane %v1775, %v1780
        %v1783 = vunpack.c.l.s4 1934713408
        %v1784 = vunpack.c.0.s8 %v1783
        %v1785 = vperm.slane %v1777, %v1784
        %v1786 = vrot.slane %v1781, 4
        %v1787 = vsel %vm1047, 0, %v1786
        %v1788 = vrot.slane %v1785, 4
        %v1789 = vsel %vm1047, 0, %v1788
        %v1790 = vrot.slane %v1722, 4
        %v1791 = vsel %vm1047, %v1790, %v1658
        %v1793 = vunpack.c.l.s4 1983009808
        %v1794 = vunpack.c.0.s8 %v1793
        %v1795 = vperm.slane %v1791, %v1794
        %v1796 = vrot.slane %v1754, 4
        %v1797 = vsel %vm1047, %v1796, %v1690
        %v1799 = vunpack.c.l.s4 1983009808
        %v1800 = vunpack.c.0.s8 %v1799
        %v1801 = vperm.slane %v1797, %v1800
        %v1802 = vrot.slane %v1801, 4
        %v1803 = vsel %vm1047, %v1802, %v1795
        %v1804 = vrot.slane %v1795, 4
        %v1805 = vsel %vm1047, %v1801, %v1804
        %v1807 = vunpack.c.l.s4 1934713408
        %v1808 = vunpack.c.0.s8 %v1807
        %v1809 = vperm.slane %v1803, %v1808
        %v1811 = vunpack.c.l.s4 1934713408
        %v1812 = vunpack.c.0.s8 %v1811
        %v1813 = vperm.slane %v1805, %v1812
        %v1814 = vrot.slane %v1809, 4
        %v1815 = vsel %vm1047, 0, %v1814
        %v1816 = vrot.slane %v1813, 4
        %v1817 = vsel %vm1047, 0, %v1816
        %v1820 = vpack.i.b16 %v1809, %v1781
        %v1822 = vshrl.u32 %v1781, 16
        %v1823 = vshrl.u32 %v1809, 16
        %v1824 = vpack.i.b16 %v1823, %v1822
        %v1828 = vpack.i.b16 %v1815, %v1787
        %v1830 = vshrl.u32 %v1787, 16
        %v1831 = vshrl.u32 %v1815, 16
        %v1832 = vpack.i.b16 %v1831, %v1830
        %v1836 = vpack.i.b16 %v1813, %v1785
        %v1838 = vshrl.u32 %v1785, 16
        %v1839 = vshrl.u32 %v1813, 16
        %v1840 = vpack.i.b16 %v1839, %v1838
        %v1844 = vpack.i.b16 %v1817, %v1789
        %v1846 = vshrl.u32 %v1789, 16
        %v1847 = vshrl.u32 %v1817, 16
        %v1848 = vpack.i.b16 %v1847, %v1846
        %1850 = vxpose.xlu0.c.b16.start [1/8] %v1820, 128
        %1851 = vxpose.xlu0.c.b16.cont [2/8] 0, 128
        %1852 = vxpose.xlu0.c.b16.cont [3/8] 0, 128
        %1853 = vxpose.xlu0.c.b16.cont [4/8] 0, 128
        %1854 = vxpose.xlu0.c.b16.cont [5/8] 0, 128
        %1855 = vxpose.xlu0.c.b16.cont [6/8] 0, 128
        %1856 = vxpose.xlu0.c.b16.cont [7/8] 0, 128
        %1857 = vxpose.xlu0.c.b16.end [8/8] 0, 128
        %v1858 = vpop.trf.xlu0
        %v1859 = vpop.trf.xlu0
        %v1860 = vpop.trf.xlu0
        %v1861 = vpop.trf.xlu0
        %v1862 = vpop.trf.xlu0
        %v1863 = vpop.trf.xlu0
        %v1864 = vpop.trf.xlu0
        %v1865 = vpop.trf.xlu0
        %1866 = vxpose.xlu0.c.b16.start [1/8] %v1824, 128
        %1867 = vxpose.xlu0.c.b16.cont [2/8] 0, 128
        %1868 = vxpose.xlu0.c.b16.cont [3/8] 0, 128
        %1869 = vxpose.xlu0.c.b16.cont [4/8] 0, 128
        %1870 = vxpose.xlu0.c.b16.cont [5/8] 0, 128
        %1871 = vxpose.xlu0.c.b16.cont [6/8] 0, 128
        %1872 = vxpose.xlu0.c.b16.cont [7/8] 0, 128
        %1873 = vxpose.xlu0.c.b16.end [8/8] 0, 128
        %v1874 = vpop.trf.xlu0
        %v1875 = vpop.trf.xlu0
        %v1876 = vpop.trf.xlu0
        %v1877 = vpop.trf.xlu0
        %v1878 = vpop.trf.xlu0
        %v1879 = vpop.trf.xlu0
        %v1880 = vpop.trf.xlu0
        %v1881 = vpop.trf.xlu0
        %1882 = vxpose.xlu0.c.b16.start [1/8] %v1828, 128
        %1883 = vxpose.xlu0.c.b16.cont [2/8] 0, 128
        %1884 = vxpose.xlu0.c.b16.cont [3/8] 0, 128
        %1885 = vxpose.xlu0.c.b16.cont [4/8] 0, 128
        %1886 = vxpose.xlu0.c.b16.cont [5/8] 0, 128
        %1887 = vxpose.xlu0.c.b16.cont [6/8] 0, 128
        %1888 = vxpose.xlu0.c.b16.cont [7/8] 0, 128
        %1889 = vxpose.xlu0.c.b16.end [8/8] 0, 128
        %v1890 = vpop.trf.xlu0
        %v1891 = vpop.trf.xlu0
        %v1892 = vpop.trf.xlu0
        %v1893 = vpop.trf.xlu0
        %v1894 = vpop.trf.xlu0
        %v1895 = vpop.trf.xlu0
        %v1896 = vpop.trf.xlu0
        %v1897 = vpop.trf.xlu0
        %1898 = vxpose.xlu0.c.b16.start [1/8] %v1832, 128
        %1899 = vxpose.xlu0.c.b16.cont [2/8] 0, 128
        %1900 = vxpose.xlu0.c.b16.cont [3/8] 0, 128
        %1901 = vxpose.xlu0.c.b16.cont [4/8] 0, 128
        %1902 = vxpose.xlu0.c.b16.cont [5/8] 0, 128
        %1903 = vxpose.xlu0.c.b16.cont [6/8] 0, 128
        %1904 = vxpose.xlu0.c.b16.cont [7/8] 0, 128
        %1905 = vxpose.xlu0.c.b16.end [8/8] 0, 128
        %v1906 = vpop.trf.xlu0
        %v1907 = vpop.trf.xlu0
        %v1908 = vpop.trf.xlu0
        %v1909 = vpop.trf.xlu0
        %v1910 = vpop.trf.xlu0
        %v1911 = vpop.trf.xlu0
        %v1912 = vpop.trf.xlu0
        %v1913 = vpop.trf.xlu0
        %1914 = vxpose.xlu0.c.b16.start [1/8] %v1836, 128
        %1915 = vxpose.xlu0.c.b16.cont [2/8] 0, 128
        %1916 = vxpose.xlu0.c.b16.cont [3/8] 0, 128
        %1917 = vxpose.xlu0.c.b16.cont [4/8] 0, 128
        %1918 = vxpose.xlu0.c.b16.cont [5/8] 0, 128
        %1919 = vxpose.xlu0.c.b16.cont [6/8] 0, 128
        %1920 = vxpose.xlu0.c.b16.cont [7/8] 0, 128
        %1921 = vxpose.xlu0.c.b16.end [8/8] 0, 128
        %v1922 = vpop.trf.xlu0
        %v1923 = vpop.trf.xlu0
        %v1924 = vpop.trf.xlu0
        %v1925 = vpop.trf.xlu0
        %v1926 = vpop.trf.xlu0
        %v1927 = vpop.trf.xlu0
        %v1928 = vpop.trf.xlu0
        %v1929 = vpop.trf.xlu0
        %1930 = vxpose.xlu0.c.b16.start [1/8] %v1840, 128
        %1931 = vxpose.xlu0.c.b16.cont [2/8] 0, 128
        %1932 = vxpose.xlu0.c.b16.cont [3/8] 0, 128
        %1933 = vxpose.xlu0.c.b16.cont [4/8] 0, 128
        %1934 = vxpose.xlu0.c.b16.cont [5/8] 0, 128
        %1935 = vxpose.xlu0.c.b16.cont [6/8] 0, 128
        %1936 = vxpose.xlu0.c.b16.cont [7/8] 0, 128
        %1937 = vxpose.xlu0.c.b16.end [8/8] 0, 128
        %v1938 = vpop.trf.xlu0
        %v1939 = vpop.trf.xlu0
        %v1940 = vpop.trf.xlu0
        %v1941 = vpop.trf.xlu0
        %v1942 = vpop.trf.xlu0
        %v1943 = vpop.trf.xlu0
        %v1944 = vpop.trf.xlu0
        %v1945 = vpop.trf.xlu0
        %1946 = vxpose.xlu0.c.b16.start [1/8] %v1844, 128
        %1947 = vxpose.xlu0.c.b16.cont [2/8] 0, 128
        %1948 = vxpose.xlu0.c.b16.cont [3/8] 0, 128
        %1949 = vxpose.xlu0.c.b16.cont [4/8] 0, 128
        %1950 = vxpose.xlu0.c.b16.cont [5/8] 0, 128
        %1951 = vxpose.xlu0.c.b16.cont [6/8] 0, 128
        %1952 = vxpose.xlu0.c.b16.cont [7/8] 0, 128
        %1953 = vxpose.xlu0.c.b16.end [8/8] 0, 128
        %v1954 = vpop.trf.xlu0
        %v1955 = vpop.trf.xlu0
        %v1956 = vpop.trf.xlu0
        %v1957 = vpop.trf.xlu0
        %v1958 = vpop.trf.xlu0
        %v1959 = vpop.trf.xlu0
        %v1960 = vpop.trf.xlu0
        %v1961 = vpop.trf.xlu0
        %1962 = vxpose.xlu0.c.b16.start [1/8] %v1848, 128
        %1963 = vxpose.xlu0.c.b16.cont [2/8] 0, 128
        %1964 = vxpose.xlu0.c.b16.cont [3/8] 0, 128
        %1965 = vxpose.xlu0.c.b16.cont [4/8] 0, 128
        %1966 = vxpose.xlu0.c.b16.cont [5/8] 0, 128
        %1967 = vxpose.xlu0.c.b16.cont [6/8] 0, 128
        %1968 = vxpose.xlu0.c.b16.cont [7/8] 0, 128
        %1969 = vxpose.xlu0.c.b16.end [8/8] 0, 128
        %v1970 = vpop.trf.xlu0
        %v1971 = vpop.trf.xlu0
        %v1972 = vpop.trf.xlu0
        %v1973 = vpop.trf.xlu0
        %v1974 = vpop.trf.xlu0
        %v1975 = vpop.trf.xlu0
        %v1976 = vpop.trf.xlu0
        %v1977 = vpop.trf.xlu0
        %v1978 = vrot.slane %v1922, 4
        %v1979 = vsel %vm1047, %v1978, %v1858
        %v1981 = vunpack.c.l.s4 1983009808
        %v1982 = vunpack.c.0.s8 %v1981
        %v1983 = vperm.slane %v1979, %v1982
        %v1984 = vrot.slane %v1954, 4
        %v1985 = vsel %vm1047, %v1984, %v1890
        %v1987 = vunpack.c.l.s4 1983009808
        %v1988 = vunpack.c.0.s8 %v1987
        %v1989 = vperm.slane %v1985, %v1988
        %v1990 = vrot.slane %v1989, 4
        %v1991 = vsel %vm1047, %v1990, %v1983
        %v1993 = vunpack.c.l.s4 1934713408
        %v1994 = vunpack.c.0.s8 %v1993
        %v1995 = vperm.slane %v1991, %v1994
        %v1996 = vrot.slane %v1995, 4
        %v1997 = vsel %vm1047, 0, %v1996
        %v1998 = vrot.slane %v1938, 4
        %v1999 = vsel %vm1047, %v1998, %v1874
        %v2001 = vunpack.c.l.s4 1983009808
        %v2002 = vunpack.c.0.s8 %v2001
        %v2003 = vperm.slane %v1999, %v2002
        %v2004 = vrot.slane %v1970, 4
        %v2005 = vsel %vm1047, %v2004, %v1906
        %v2007 = vunpack.c.l.s4 1983009808
        %v2008 = vunpack.c.0.s8 %v2007
        %v2009 = vperm.slane %v2005, %v2008
        %v2010 = vrot.slane %v2009, 4
        %v2011 = vsel %vm1047, %v2010, %v2003
        %v2013 = vunpack.c.l.s4 1934713408
        %v2014 = vunpack.c.0.s8 %v2013
        %v2015 = vperm.slane %v2011, %v2014
        %v2016 = vrot.slane %v2015, 4
        %v2017 = vsel %vm1047, 0, %v2016
        %v2020 = vpack.i.b16 %v2015, %v1995
        %v2021 = vshrl.u32 %v1995, 16
        %v2022 = vshrl.u32 %v2015, 16
        %v2023 = vpack.i.b16 %v2022, %v2021
        %v2026 = vpack.i.b16 %v2017, %v1997
        %v2027 = vshrl.u32 %v1997, 16
        %v2028 = vshrl.u32 %v2017, 16
        %v2029 = vpack.i.b16 %v2028, %v2027
        %v2031 = vsel %vm1495, %v2020, 0
        %v2034 = vsel %vm1495, %v1630, 0
        %2036 = vmatpush.bf16.xpose.msra.mxu0 0
        %2037 = vmatpush.bf16.xpose.msra.mxu0 0
        %2038 = vmatpush.bf16.xpose.msra.mxu0 0
        %2039 = vmatpush.bf16.xpose.msra.mxu0 0
        %2040 = vmatpush.bf16.xpose.msra.mxu0 0
        %2041 = vmatpush.bf16.xpose.msra.mxu0 0
        %2042 = vmatpush.bf16.xpose.msra.mxu0 0
        %2043 = vmatpush.bf16.xpose.msra.mxu0 %v2034
        %2044 = vmatmul.bf16.gmra.mxu0 %v2031
        %v2045 = vpop.f32.mrf.mxu0
        %v2046 = vadd.f32 0.0, %v2045
        %v2047 = vpop.f32.mrf.mxu0
        %2048 = vdwg.mxu0
        %v2050 = vsel %vm1495, %v2023, 0
        %v2053 = vsel %vm1495, %v1631, 0
        %2055 = vmatpush.bf16.xpose.msra.mxu0 0
        %2056 = vmatpush.bf16.xpose.msra.mxu0 0
        %2057 = vmatpush.bf16.xpose.msra.mxu0 0
        %2058 = vmatpush.bf16.xpose.msra.mxu0 0
        %2059 = vmatpush.bf16.xpose.msra.mxu0 0
        %2060 = vmatpush.bf16.xpose.msra.mxu0 0
        %2061 = vmatpush.bf16.xpose.msra.mxu0 0
        %2062 = vmatpush.bf16.xpose.msra.mxu0 %v2053
        %2063 = vmatmul.bf16.gmra.mxu0 %v2050
        %v2064 = vpop.f32.mrf.mxu0
        %v2065 = vadd.f32 0.0, %v2064
        %v2066 = vpop.f32.mrf.mxu0
        %2067 = vdwg.mxu0
        %v2069 = vsel %vm1495, %v2026, 0
        %v2072 = vsel %vm1495, %v1632, 0
        %2074 = vmatpush.bf16.xpose.msra.mxu0 0
        %2075 = vmatpush.bf16.xpose.msra.mxu0 0
        %2076 = vmatpush.bf16.xpose.msra.mxu0 0
        %2077 = vmatpush.bf16.xpose.msra.mxu0 0
        %2078 = vmatpush.bf16.xpose.msra.mxu0 0
        %2079 = vmatpush.bf16.xpose.msra.mxu0 0
        %2080 = vmatpush.bf16.xpose.msra.mxu0 0
        %2081 = vmatpush.bf16.xpose.msra.mxu0 %v2072
        %2082 = vmatmul.bf16.gmra.mxu0 %v2069
        %v2083 = vpop.f32.mrf.mxu0
        %v2084 = vadd.f32 0.0, %v2083
        %v2085 = vpop.f32.mrf.mxu0
        %2086 = vdwg.mxu0
        %v2088 = vsel %vm1495, %v2029, 0
        %v2091 = vsel %vm1495, %v1633, 0
        %2093 = vmatpush.bf16.xpose.msra.mxu0 0
        %2094 = vmatpush.bf16.xpose.msra.mxu0 0
        %2095 = vmatpush.bf16.xpose.msra.mxu0 0
        %2096 = vmatpush.bf16.xpose.msra.mxu0 0
        %2097 = vmatpush.bf16.xpose.msra.mxu0 0
        %2098 = vmatpush.bf16.xpose.msra.mxu0 0
        %2099 = vmatpush.bf16.xpose.msra.mxu0 0
        %2100 = vmatpush.bf16.xpose.msra.mxu0 %v2091
        %2101 = vmatmul.bf16.gmra.mxu0 %v2088
        %v2102 = vpop.f32.mrf.mxu0
        %v2103 = vadd.f32 0.0, %v2102
        %v2104 = vpop.f32.mrf.mxu0
        %2105 = vdwg.mxu0
        %2106 = vxpose.xlu0.b32.start [1/16] %v2046, 128
        %2107 = vxpose.xlu0.b32.cont [2/16] 0.0, 128
        %2108 = vxpose.xlu0.b32.cont [3/16] 0.0, 128
        %2109 = vxpose.xlu0.b32.cont [4/16] 0.0, 128
        %2110 = vxpose.xlu0.b32.cont [5/16] 0.0, 128
        %2111 = vxpose.xlu0.b32.cont [6/16] 0.0, 128
        %2112 = vxpose.xlu0.b32.cont [7/16] 0.0, 128
        %2113 = vxpose.xlu0.b32.cont [8/16] 0.0, 128
        %2114 = vxpose.xlu0.b32.cont [9/16] 0.0, 128
        %2115 = vxpose.xlu0.b32.cont [10/16] 0.0, 128
        %2116 = vxpose.xlu0.b32.cont [11/16] 0.0, 128
        %2117 = vxpose.xlu0.b32.cont [12/16] 0.0, 128
        %2118 = vxpose.xlu0.b32.cont [13/16] 0.0, 128
        %2119 = vxpose.xlu0.b32.cont [14/16] 0.0, 128
        %2120 = vxpose.xlu0.b32.cont [15/16] 0.0, 128
        %2121 = vxpose.xlu0.b32.end [16/16] 0.0, 128
        %v2122 = vpop.trf.xlu0
        %v2123 = vpop.trf.xlu0
        %v2124 = vpop.trf.xlu0
        %v2125 = vpop.trf.xlu0
        %v2126 = vpop.trf.xlu0
        %v2127 = vpop.trf.xlu0
        %v2128 = vpop.trf.xlu0
        %v2129 = vpop.trf.xlu0
        %v2130 = vpop.trf.xlu0
        %v2131 = vpop.trf.xlu0
        %v2132 = vpop.trf.xlu0
        %v2133 = vpop.trf.xlu0
        %v2134 = vpop.trf.xlu0
        %v2135 = vpop.trf.xlu0
        %v2136 = vpop.trf.xlu0
        %v2137 = vpop.trf.xlu0
        %2138 = vxpose.xlu0.b32.start [1/16] %v2065, 128
        %2139 = vxpose.xlu0.b32.cont [2/16] 0.0, 128
        %2140 = vxpose.xlu0.b32.cont [3/16] 0.0, 128
        %2141 = vxpose.xlu0.b32.cont [4/16] 0.0, 128
        %2142 = vxpose.xlu0.b32.cont [5/16] 0.0, 128
        %2143 = vxpose.xlu0.b32.cont [6/16] 0.0, 128
        %2144 = vxpose.xlu0.b32.cont [7/16] 0.0, 128
        %2145 = vxpose.xlu0.b32.cont [8/16] 0.0, 128
        %2146 = vxpose.xlu0.b32.cont [9/16] 0.0, 128
        %2147 = vxpose.xlu0.b32.cont [10/16] 0.0, 128
        %2148 = vxpose.xlu0.b32.cont [11/16] 0.0, 128
        %2149 = vxpose.xlu0.b32.cont [12/16] 0.0, 128
        %2150 = vxpose.xlu0.b32.cont [13/16] 0.0, 128
        %2151 = vxpose.xlu0.b32.cont [14/16] 0.0, 128
        %2152 = vxpose.xlu0.b32.cont [15/16] 0.0, 128
        %2153 = vxpose.xlu0.b32.end [16/16] 0.0, 128
        %v2154 = vpop.trf.xlu0
        %v2155 = vpop.trf.xlu0
        %v2156 = vpop.trf.xlu0
        %v2157 = vpop.trf.xlu0
        %v2158 = vpop.trf.xlu0
        %v2159 = vpop.trf.xlu0
        %v2160 = vpop.trf.xlu0
        %v2161 = vpop.trf.xlu0
        %v2162 = vpop.trf.xlu0
        %v2163 = vpop.trf.xlu0
        %v2164 = vpop.trf.xlu0
        %v2165 = vpop.trf.xlu0
        %v2166 = vpop.trf.xlu0
        %v2167 = vpop.trf.xlu0
        %v2168 = vpop.trf.xlu0
        %v2169 = vpop.trf.xlu0
        %2170 = vxpose.xlu0.b32.start [1/16] %v2084, 128
        %2171 = vxpose.xlu0.b32.cont [2/16] 0.0, 128
        %2172 = vxpose.xlu0.b32.cont [3/16] 0.0, 128
        %2173 = vxpose.xlu0.b32.cont [4/16] 0.0, 128
        %2174 = vxpose.xlu0.b32.cont [5/16] 0.0, 128
        %2175 = vxpose.xlu0.b32.cont [6/16] 0.0, 128
        %2176 = vxpose.xlu0.b32.cont [7/16] 0.0, 128
        %2177 = vxpose.xlu0.b32.cont [8/16] 0.0, 128
        %2178 = vxpose.xlu0.b32.cont [9/16] 0.0, 128
        %2179 = vxpose.xlu0.b32.cont [10/16] 0.0, 128
        %2180 = vxpose.xlu0.b32.cont [11/16] 0.0, 128
        %2181 = vxpose.xlu0.b32.cont [12/16] 0.0, 128
        %2182 = vxpose.xlu0.b32.cont [13/16] 0.0, 128
        %2183 = vxpose.xlu0.b32.cont [14/16] 0.0, 128
        %2184 = vxpose.xlu0.b32.cont [15/16] 0.0, 128
        %2185 = vxpose.xlu0.b32.end [16/16] 0.0, 128
        %v2186 = vpop.trf.xlu0
        %v2187 = vpop.trf.xlu0
        %v2188 = vpop.trf.xlu0
        %v2189 = vpop.trf.xlu0
        %v2190 = vpop.trf.xlu0
        %v2191 = vpop.trf.xlu0
        %v2192 = vpop.trf.xlu0
        %v2193 = vpop.trf.xlu0
        %v2194 = vpop.trf.xlu0
        %v2195 = vpop.trf.xlu0
        %v2196 = vpop.trf.xlu0
        %v2197 = vpop.trf.xlu0
        %v2198 = vpop.trf.xlu0
        %v2199 = vpop.trf.xlu0
        %v2200 = vpop.trf.xlu0
        %v2201 = vpop.trf.xlu0
        %2202 = vxpose.xlu0.b32.start [1/16] %v2103, 128
        %2203 = vxpose.xlu0.b32.cont [2/16] 0.0, 128
        %2204 = vxpose.xlu0.b32.cont [3/16] 0.0, 128
        %2205 = vxpose.xlu0.b32.cont [4/16] 0.0, 128
        %2206 = vxpose.xlu0.b32.cont [5/16] 0.0, 128
        %2207 = vxpose.xlu0.b32.cont [6/16] 0.0, 128
        %2208 = vxpose.xlu0.b32.cont [7/16] 0.0, 128
        %2209 = vxpose.xlu0.b32.cont [8/16] 0.0, 128
        %2210 = vxpose.xlu0.b32.cont [9/16] 0.0, 128
        %2211 = vxpose.xlu0.b32.cont [10/16] 0.0, 128
        %2212 = vxpose.xlu0.b32.cont [11/16] 0.0, 128
        %2213 = vxpose.xlu0.b32.cont [12/16] 0.0, 128
        %2214 = vxpose.xlu0.b32.cont [13/16] 0.0, 128
        %2215 = vxpose.xlu0.b32.cont [14/16] 0.0, 128
        %2216 = vxpose.xlu0.b32.cont [15/16] 0.0, 128
        %2217 = vxpose.xlu0.b32.end [16/16] 0.0, 128
        %v2218 = vpop.trf.xlu0
        %v2219 = vpop.trf.xlu0
        %v2220 = vpop.trf.xlu0
        %v2221 = vpop.trf.xlu0
        %v2222 = vpop.trf.xlu0
        %v2223 = vpop.trf.xlu0
        %v2224 = vpop.trf.xlu0
        %v2225 = vpop.trf.xlu0
        %v2226 = vpop.trf.xlu0
        %v2227 = vpop.trf.xlu0
        %v2228 = vpop.trf.xlu0
        %v2229 = vpop.trf.xlu0
        %v2230 = vpop.trf.xlu0
        %v2231 = vpop.trf.xlu0
        %v2232 = vpop.trf.xlu0
        %v2233 = vpop.trf.xlu0
        %v2234 = vrot.slane %v2186, 4
        %v2235 = vsel %vm834, %v2234, %v2122
        %v2236 = vrot.slane %v2122, 4
        %v2237 = vsel %vm834, %v2186, %v2236
        %v2239 = vunpack.c.l.s4 1983009808
        %v2240 = vunpack.c.0.s8 %v2239
        %v2241 = vperm.slane %v2235, %v2240
        %v2243 = vunpack.c.l.s4 1983009808
        %v2244 = vunpack.c.0.s8 %v2243
        %v2245 = vperm.slane %v2237, %v2244
        %v2246 = vrot.slane %v2218, 4
        %v2247 = vsel %vm834, %v2246, %v2154
        %v2248 = vrot.slane %v2154, 4
        %v2249 = vsel %vm834, %v2218, %v2248
        %v2251 = vunpack.c.l.s4 1983009808
        %v2252 = vunpack.c.0.s8 %v2251
        %v2253 = vperm.slane %v2247, %v2252
        %v2255 = vunpack.c.l.s4 1983009808
        %v2256 = vunpack.c.0.s8 %v2255
        %v2257 = vperm.slane %v2249, %v2256
        %v2258 = vrot.slane %v2253, 4
        %v2259 = vsel %vm834, %v2258, %v2241
        %v2260 = vrot.slane %v2241, 4
        %v2261 = vsel %vm834, %v2253, %v2260
        %v2263 = vunpack.c.l.s4 1934713408
        %v2264 = vunpack.c.0.s8 %v2263
        %v2265 = vperm.slane %v2259, %v2264
        %v2267 = vunpack.c.l.s4 1934713408
        %v2268 = vunpack.c.0.s8 %v2267
        %v2269 = vperm.slane %v2261, %v2268
        %v2270 = vrot.slane %v2257, 4
        %v2271 = vsel %vm834, %v2270, %v2245
        %v2272 = vrot.slane %v2245, 4
        %v2273 = vsel %vm834, %v2257, %v2272
        %v2275 = vunpack.c.l.s4 1934713408
        %v2276 = vunpack.c.0.s8 %v2275
        %v2277 = vperm.slane %v2271, %v2276
        %v2279 = vunpack.c.l.s4 1934713408
        %v2280 = vunpack.c.0.s8 %v2279
        %v2281 = vperm.slane %v2273, %v2280
        %v2282 = vrot.slane %v2265, 4
        %v2283 = vsel %vm834, 0.0, %v2282
        %v2284 = vrot.slane %v2269, 4
        %v2285 = vsel %vm834, 0.0, %v2284
        %v2286 = vrot.slane %v2277, 4
        %v2287 = vsel %vm834, 0.0, %v2286
        %v2288 = vrot.slane %v2281, 4
        %v2289 = vsel %vm834, 0.0, %v2288
        %v2290 = vsel %vm834, %v2284, %v2265
        %v2292 = vunpack.c.l.s4 1983009808
        %v2293 = vunpack.c.0.s8 %v2292
        %v2294 = vperm.slane %v2290, %v2293
        %v2295 = vrot.slane %v2285, 4
        %v2296 = vsel %vm834, %v2295, %v2283
        %v2298 = vunpack.c.l.s4 1983009808
        %v2299 = vunpack.c.0.s8 %v2298
        %v2300 = vperm.slane %v2296, %v2299
        %v2301 = vsel %vm834, %v2288, %v2277
        %v2303 = vunpack.c.l.s4 1983009808
        %v2304 = vunpack.c.0.s8 %v2303
        %v2305 = vperm.slane %v2301, %v2304
        %v2306 = vrot.slane %v2289, 4
        %v2307 = vsel %vm834, %v2306, %v2287
        %v2309 = vunpack.c.l.s4 1983009808
        %v2310 = vunpack.c.0.s8 %v2309
        %v2311 = vperm.slane %v2307, %v2310
        %v2312 = vrot.slane %v2300, 4
        %v2313 = vsel %vm834, %v2312, %v2294
        %v2314 = vrot.slane %v2294, 4
        %v2315 = vsel %vm834, %v2300, %v2314
        %v2317 = vunpack.c.l.s4 1934713408
        %v2318 = vunpack.c.0.s8 %v2317
        %v2319 = vperm.slane %v2313, %v2318
        %v2321 = vunpack.c.l.s4 1934713408
        %v2322 = vunpack.c.0.s8 %v2321
        %v2323 = vperm.slane %v2315, %v2322
        %v2324 = vrot.slane %v2311, 4
        %v2325 = vsel %vm834, %v2324, %v2305
        %v2326 = vrot.slane %v2305, 4
        %v2327 = vsel %vm834, %v2311, %v2326
        %v2329 = vunpack.c.l.s4 1934713408
        %v2330 = vunpack.c.0.s8 %v2329
        %v2331 = vperm.slane %v2325, %v2330
        %v2333 = vunpack.c.l.s4 1934713408
        %v2334 = vunpack.c.0.s8 %v2333
        %v2335 = vperm.slane %v2327, %v2334
        %v2336 = vrot.slane %v2331, 4
        %v2337 = vsel %vm834, %v2336, %v2319
        %v2338 = vrot.slane %v2319, 4
        %v2339 = vsel %vm834, %v2331, %v2338
        %v2340 = vrot.slane %v2335, 4
        %v2341 = vsel %vm834, %v2340, %v2323
        %v2342 = vrot.slane %v2323, 4
        %v2343 = vsel %vm834, %v2335, %v2342
        %2345 = vrot.lane.b32.xlu0 %v2339, 8
        %v2346 = vpop.permute.xlu0 %2345
        %2349 = vrot.lane.b32.xlu0 %v2341, 16
        %v2350 = vpop.permute.xlu0 %2349
        %2353 = vrot.lane.b32.xlu0 %v2343, 24
        %v2354 = vpop.permute.xlu0 %2353
        %v2356 = vsel %vm1495, %v2337, %v2346
        %vm2357 = vcmask 130048
        %v2358 = vsel %vm2357, %v2356, %v2350
        %vm2359 = vcmask 195584
        %v2360 = vsel %vm2359, %v2358, %v2354
        %v2361 = vpack.c.bf16 %v2360, %v2360
        %v2362 = vld [vmem:[#allocation2] sm:$0xf]
        %v2363 = vld [vmem:[#allocation2 + $0x4] sm:$0xf]
        %v2364 = vld [vmem:[#allocation2 + $0x8] sm:$0xf]
        %v2365 = vld [vmem:[#allocation2 + $0xc] sm:$0xf]
        %v2366 = vld [vmem:[%s11] sm:$0x1]
        %v2368 = vperm.slane %v2366, 0
        %v2374 = vunpack.c.l.b16 %v2362
        %v2375 = vunpack.c.l.b16 %v2363
        %v2376 = vunpack.c.l.b16 %v2364
        %v2377 = vunpack.c.l.b16 %v2365
        %v2378 = vpack.c.b16 %v2375, %v2374
        %v2379 = vpack.c.b16 %v2377, %v2376
        %v2383 = vsel %vm653, %v2361, 0
        %2385 = vmatpush.bf16.msra.mxu0 0
        %2386 = vmatpush.bf16.msra.mxu0 0
        %2387 = vmatpush.bf16.msra.mxu0 0
        %2388 = vmatpush.bf16.msra.mxu0 0
        %2389 = vmatpush.bf16.msra.mxu0 0
        %2390 = vmatpush.bf16.msra.mxu0 0
        %2391 = vmatpush.bf16.msra.mxu0 %v2379
        %2392 = vmatpush.bf16.msra.mxu0 %v2378
        %2393 = vmatmul.bf16.gmra.mxu0 %v2383
        %v2394 = vpop.f32.mrf.mxu0
        %v2395 = vadd.f32 %v2368, %v2394
        %v2396 = vpop.f32.mrf.mxu0
        %2397 = vdwg.mxu0
        %v2398 = vadd.f32 %v690, %v2395
        %v2399 = vld [vmem:[%s12] sm:$0x1]
        %v2400 = vld [vmem:[%s13] sm:$0x1]
        %v2401 = vsel %vm653, %v2398, 0.0
        %2402 = vadd.xlane.f32.xlu0 %v2401
        %v2403 = vpop.xlane.xlu0 %2402
        %v2404 = vmul.f32 %v2403, %v663
        %v2405 = vsub.f32 %v2398, %v2404
        %v2406 = vmul.f32 %v2405, %v2405
        %v2407 = vsel %vm653, %v2406, 0.0
        %2408 = vadd.xlane.f32.xlu0 %v2407
        %v2409 = vpop.xlane.xlu0 %2408
        %v2410 = vmul.f32 %v2409, %v663
        %v2411 = vadd.f32 %v2410, 1e-05
        %v2412 = vrsqrt.pop %v2411
        %v2413 = vmul.f32 %v2412, %v2411
        %v2414 = vmul.f32 %v2413, %v2412
        %v2415 = vmul.f32 0.5, %v2414
        %v2416 = vsub.f32 1.5, %v2415
        %v2417 = vmul.f32 %v2412, %v2416
        %vm2418 = vweird.f32 %v2411
        %vm2419 = vweird.f32 %v2412
        %vm2420 = vmor %vm2418, %vm2419
        %v2421 = vsel %vm2420, %v2412, %v2417
        %v2422 = vmul.f32 %v2405, %v2421
        %v2424 = vperm.slane %v2399, 0
        %v2426 = vmul.f32 %v2422, %v2424
        %v2428 = vperm.slane %v2400, 0
        %v2430 = vadd.f32 %v2426, %v2428
        %v2431 = vpack.c.bf16 %v2430, %v2430
        %v2432 = vld [vmem:[#allocation5] sm:$0xf]
        %v2433 = vld [vmem:[#allocation5 + $0x4] sm:$0xf]
        %v2434 = vld [vmem:[#allocation5 + $0x8] sm:$0xf]
        %v2435 = vld [vmem:[#allocation5 + $0xc] sm:$0xf]
        %v2436 = vld [vmem:[%s15] sm:$0x1]
        %v2438 = vperm.slane %v2436, 0
        %v2444 = vunpack.c.l.b16 %v2432
        %v2445 = vunpack.c.l.b16 %v2433
        %v2446 = vunpack.c.l.b16 %v2434
        %v2447 = vunpack.c.l.b16 %v2435
        %v2448 = vpack.c.b16 %v2445, %v2444
        %v2449 = vpack.c.b16 %v2447, %v2446
        %v2453 = vsel %vm653, %v2431, 0
        %2455 = vmatpush.bf16.msra.mxu0 0
        %2456 = vmatpush.bf16.msra.mxu0 0
        %2457 = vmatpush.bf16.msra.mxu0 0
        %2458 = vmatpush.bf16.msra.mxu0 0
        %2459 = vmatpush.bf16.msra.mxu0 0
        %2460 = vmatpush.bf16.msra.mxu0 0
        %2461 = vmatpush.bf16.msra.mxu0 %v2449
        %2462 = vmatpush.bf16.msra.mxu0 %v2448
        %2463 = vmatmul.bf16.gmra.mxu0 %v2453
        %v2464 = vpop.f32.mrf.mxu0
        %v2465 = vadd.f32 %v2438, %v2464
        %v2466 = vpop.f32.mrf.mxu0
        %2467 = vdwg.mxu0
        %v2468 = vmul.f32 %v2465, 0.5
        %v2469 = vmul.f32 %v2465, 0.70710677
        %v2470 = vmul.f32 %v2469, %v2469
        %v2471 = vmin.f32 16.0, %v2470
        %v2472 = vmul.f32 %v2471, 2.1237322e-06
        %v2473 = vadd.f32 %v2472, 0.00028619796
        %v2474 = vmul.f32 %v2471, %v2473
        %v2475 = vadd.f32 %v2474, 0.0036580483
        %v2476 = vmul.f32 %v2471, %v2475
        %v2477 = vadd.f32 %v2476, 0.05243302
        %v2478 = vmul.f32 %v2471, %v2477
        %v2479 = vadd.f32 %v2478, 0.18741608
        %v2480 = vmul.f32 %v2471, %v2479
        %v2481 = vadd.f32 %v2480, 1.1283791
        %v2482 = vmul.f32 %v2469, %v2481
        %v2483 = vmul.f32 %v2471, 3.8918573e-05
        %v2484 = vadd.f32 %v2483, 0.001143296
        %v2485 = vmul.f32 %v2471, %v2484
        %v2486 = vadd.f32 %v2485, 0.014752088
        %v2487 = vmul.f32 %v2471, %v2486
        %v2488 = vadd.f32 %v2487, 0.112945676
        %v2489 = vmul.f32 %v2471, %v2488
        %v2490 = vadd.f32 %v2489, 0.4994258
        %v2491 = vmul.f32 %v2471, %v2490
        %v2492 = vadd.f32 %v2491, 1.0
        %v2493 = vrcp.pop %v2492
        %v2494 = vmul.f32 %v2492, %v2493
        %v2495 = vsub.f32 1.0, %v2494
        %v2496 = vmul.f32 %v2493, %v2495
        %v2497 = vadd.f32 %v2493, %v2496
        %vm2498 = vweird.f32 %v2492
        %vm2499 = vweird.f32 %v2493
        %vm2500 = vmor %vm2498, %vm2499
        %v2501 = vsel %vm2500, %v2493, %v2497
        %v2502 = vand.u32 2147483647, %v2492
        %vm2503 = vcmp.eq.f32.partialorder %v2502, 8.507059e+37
        %v2504 = vand.u32 %v2492, 2147483648
        %v2505 = vor.u32 1.1754944e-38, %v2504
        %v2506 = vsel %vm2503, %v2505, %v2501
        %v2507 = vmul.f32 %v2482, %v2506
        %v2508 = vmin.f32 %v2507, 1.0
        %v2509 = vmax.f32 %v2508, -1.0
        %v2510 = vadd.f32 %v2509, 1.0
        %v2511 = vmul.f32 %v2468, %v2510
        %v2512 = vpack.c.bf16 %v2511, %v2511
        %v2513 = vld [vmem:[%s16] sm:$0xf]
        %v2514 = vld [vmem:[%s16 + $0x4] sm:$0xf]
        %v2515 = vld [vmem:[%s16 + $0x8] sm:$0xf]
        %v2516 = vld [vmem:[%s16 + $0xc] sm:$0xf]
        %v2517 = vld [vmem:[%s16 + $0x10] sm:$0xf]
        %v2518 = vld [vmem:[%s16 + $0x14] sm:$0xf]
        %v2519 = vld [vmem:[%s16 + $0x18] sm:$0xf]
        %v2520 = vld [vmem:[%s16 + $0x1c] sm:$0xf]
        %v2521 = vld [vmem:[%s16 + $0x20] sm:$0xf]
        %v2522 = vld [vmem:[%s16 + $0x24] sm:$0xf]
        %v2523 = vld [vmem:[%s16 + $0x28] sm:$0xf]
        %v2524 = vld [vmem:[%s16 + $0x2c] sm:$0xf]
        %v2525 = vld [vmem:[%s16 + $0x30] sm:$0xf]
        %v2526 = vld [vmem:[%s16 + $0x34] sm:$0xf]
        %v2527 = vld [vmem:[%s16 + $0x38] sm:$0xf]
        %v2528 = vld [vmem:[%s16 + $0x3c] sm:$0xf]
        %v2529 = vld [vmem:[%s17] sm:$0x1]
        %v2531 = vperm.slane %v2529, 0
        %v2549 = vunpack.c.l.b16 %v2513
        %v2550 = vunpack.c.l.b16 %v2514
        %v2551 = vunpack.c.l.b16 %v2515
        %v2552 = vunpack.c.l.b16 %v2516
        %v2553 = vunpack.c.l.b16 %v2517
        %v2554 = vunpack.c.l.b16 %v2518
        %v2555 = vunpack.c.l.b16 %v2519
        %v2556 = vunpack.c.l.b16 %v2520
        %v2557 = vunpack.c.l.b16 %v2521
        %v2558 = vunpack.c.l.b16 %v2522
        %v2559 = vunpack.c.l.b16 %v2523
        %v2560 = vunpack.c.l.b16 %v2524
        %v2561 = vunpack.c.l.b16 %v2525
        %v2562 = vunpack.c.l.b16 %v2526
        %v2563 = vunpack.c.l.b16 %v2527
        %v2564 = vunpack.c.l.b16 %v2528
        %v2565 = vpack.c.b16 %v2550, %v2549
        %v2566 = vpack.c.b16 %v2552, %v2551
        %v2567 = vpack.c.b16 %v2554, %v2553
        %v2568 = vpack.c.b16 %v2556, %v2555
        %v2569 = vpack.c.b16 %v2558, %v2557
        %v2570 = vpack.c.b16 %v2560, %v2559
        %v2571 = vpack.c.b16 %v2562, %v2561
        %v2572 = vpack.c.b16 %v2564, %v2563
        %2581 = vmatpush.bf16.msra.mxu0 %v2572
        %2582 = vmatpush.bf16.msra.mxu0 %v2571
        %2583 = vmatpush.bf16.msra.mxu0 %v2570
        %2584 = vmatpush.bf16.msra.mxu0 %v2569
        %2585 = vmatpush.bf16.msra.mxu0 %v2568
        %2586 = vmatpush.bf16.msra.mxu0 %v2567
        %2587 = vmatpush.bf16.msra.mxu0 %v2566
        %2588 = vmatpush.bf16.msra.mxu0 %v2565
        %2589 = vmatmul.bf16.gmra.mxu0 %v2512
        %v2590 = vpop.f32.mrf.mxu0
        %v2591 = vadd.f32 %v2531, %v2590
        %v2592 = vpop.f32.mrf.mxu0
        %2593 = vdwg.mxu0
        %v2594 = vadd.f32 %v2398, %v2591
        %2595 = vst.msk [vmem:[%s635] sm:$0xff] %vm653, %v2594
        %s2596 = sand.u32 %s446, 1
        %s2597 = scalar_lea.sflag [#allocation4], %s2596
        %s2598 = sand.u32 %s446, 1
        %s2599 = smul.addr %s2598, 8
        %s2600 = scalar_lea.vmem [#allocation7], %s2599
        // Predicated region
        $region101: #{tpu_custom_call.1} parent=91 // pred_check
          %p2601 = pneg %p456
        $region102: #{tpu_custom_call.1} parent=91 // pred_check_branch
          %2603 = sbr.rel (%p2601) target = $region104
        $region103: #{tpu_custom_call.1} parent=91 // pred_region
          %2605 = vsyncadd %s2597, 0
          %s2606 = sadd.s32 %s39, %s38
          %s2607 = smul.addr %s2606, 8
          %s2608 = scalar_lea.hbm %s18, %s2607
          %s2610 = sshll.u32 %s2600, 4
          %s2611 = int_to_ptr.vmem [resolvable:$true] %s2610
          %s2612 = sshll.u32 %s2608, 4
          %s2613 = int_to_ptr.hbm [resolvable:$true] %s2612
          %2615 = dma.vmem_to_hbm [thread:$0]  %s2611, 128, %s2613, %s2597
        $region104: #{tpu_custom_call.1} parent=91 // pred_fallthru
          _
      $region92: #{tpu_custom_call.1} parent=5 // pred_fallthru
        _
      %p2616 = scmp.le.s32.totalorder 2, %s29
      // Predicated region
      $region105: #{tpu_custom_call.1} parent=5 // pred_check
        %p2617 = pneg %p2616
      $region106: #{tpu_custom_call.1} parent=5 // pred_check_branch
        %2619 = sbr.rel (%p2617) target = $region108
      $region107: #{tpu_custom_call.1} parent=5 // pred_region
        %s2620 = ssub.s32 %s29, 2
        // Predicated region
        $region109: #{tpu_custom_call.1} parent=107 // pred_check
          %p2621 = pneg %p462
        $region110: #{tpu_custom_call.1} parent=107 // pred_check_branch
          %2623 = sbr.rel (%p2621) target = $region112
        $region111: #{tpu_custom_call.1} parent=107 // pred_region
          %s2624 = sand.u32 %s447, 1
          %s2625 = scalar_lea.sflag [#allocation4], %s2624
          %s2626 = sand.u32 %s447, 1
          %s2627 = smul.addr %s2626, 8
          %s2628 = scalar_lea.vmem [#allocation7], %s2627
          %2630 = dma.done %s2625, 128
        $region112: #{tpu_custom_call.1} parent=107 // pred_fallthru
          _
      $region108: #{tpu_custom_call.1} parent=5 // pred_fallthru
        _
    $region6: #{tpu_custom_call.1} parent=1 // loop_footer
      %s33 = sadd.s32 1, %s29
    $region7: #{tpu_custom_call.1} parent=1 // loop_footer_branch
      %28 = sbr.rel target = $region3
    $region8: #{tpu_custom_call.1} parent=1 // loop_exit
      _
    %2631 = vsyncpa [#allocation3], 1
    %s2632 = scalar_lea.sflag [#allocation3], 1
    %2633 = vsyncpa %s2632, 1
    %2634 = vsyncpa [#allocation6], 1
    %2635 = vsyncpa [#allocation4], 1
    %s2636 = scalar_lea.sflag [#allocation4], 1
    %2637 = vsyncpa %s2636, 1

</llo_original>
